<compile_context>
chip_gen: v5e
topology: v5e:2x2
jax: 0.10.0
libtpu: 0.0.40
codegen_flags: <defaults>
</compile_context>

<pallas_src>
import functools

import jax
import jax.numpy as jnp
from jax.experimental import pallas as pl
from jax.experimental.pallas import tpu as pltpu


def _round_up(n, m):
    return (n + m - 1) // m * m


# ------------------------------ Pallas kernel --------------------------------
def seq2seq_kernel(x_ref,
                   wih_e_ref, whh_e_ref, b_e_ref,
                   wih_d_ref, whh_d_ref, b_d_ref,
                   wfc_ref, bfc_ref,
                   out_ref,
                   *, T, Bp):
    """Whole seq2seq forward, everything VMEM-resident.

    Padded shapes (done in the wrapper):
      x_ref  : (T*Bp, Ip)  bf16   time-major, batch flattened into rows
      wih_*  : (Ip, 4*Hp)  bf16   pre-transposed -> kernel computes x @ W
      whh_*  : (Hp, 4*Hp)  bf16
      b_*    : (1, 4*Hp)   f32    (= b_ih + b_hh, gate-block padded)
      wfc    : (Hp, Op)    bf16
      bfc    : (1, Op)     f32
      out_ref: (Bp, Op)    f32    lane-dense output slab
    """
    Hp = whh_e_ref.shape[0]
    cdt = x_ref.dtype

    x2d = x_ref[...]                                   # (T*Bp, Ip)
    whh_e = whh_e_ref[...]
    whh_d = whh_d_ref[...]

    # ---- hoisted input projections: one large MXU matmul, bias folded ------
    gx_e = (jnp.dot(x2d, wih_e_ref[...], preferred_element_type=jnp.float32)
            + b_e_ref[...])                            # (T*Bp, 4Hp) f32
    x_last = x2d[(T - 1) * Bp:T * Bp, :]               # (Bp, Ip)
    gx_d = (jnp.dot(x_last, wih_d_ref[...], preferred_element_type=jnp.float32)
            + b_d_ref[...])                            # (Bp, 4Hp) f32

    def lstm_step(gx, h, c, whh):
        # PyTorch gate order: i, f, g, o.  Hp % 128 == 0 so every gate slice
        # is a whole-vreg-width (lane-aligned) select.
        gates = gx + jnp.dot(h.astype(cdt), whh,
                             preferred_element_type=jnp.float32)  # (Bp, 4Hp)
        i_g = jax.nn.sigmoid(gates[:, 0 * Hp:1 * Hp])
        f_g = jax.nn.sigmoid(gates[:, 1 * Hp:2 * Hp])
        g_g = jnp.tanh(gates[:, 2 * Hp:3 * Hp])
        o_g = jax.nn.sigmoid(gates[:, 3 * Hp:4 * Hp])
        c_new = f_g * c + i_g * g_g
        h_new = o_g * jnp.tanh(c_new)
        return h_new, c_new

    h = jnp.zeros((Bp, Hp), jnp.float32)
    c = jnp.zeros((Bp, Hp), jnp.float32)

    # ---- encoder: fully unrolled recurrence (static T, static slices) ------
    for t in range(T):
        h, c = lstm_step(gx_e[t * Bp:(t + 1) * Bp, :], h, c, whh_e)

    # ---- decoder: single step on input_seq[-1] with encoder (h, c) ---------
    h_dec, _ = lstm_step(gx_d, h, c, whh_d)

    # ---- fc ------------------------------------------------------------------
    out_ref[...] = (jnp.dot(h_dec.astype(cdt), wfc_ref[...],
                            preferred_element_type=jnp.float32)
                    + bfc_ref[...])                    # (Bp, Op)


# ------------------------- one-time weight preparation ------------------------
def _pack_lstm(wih, whh, bih, bhh, in_size, H, Ip, Hp, dtype):
    """Gate-block pad to (Ip/Hp, 4Hp), transpose to (in, out), fuse biases."""
    w4 = (jnp.zeros((4, Hp, Ip), jnp.float32)
          .at[:, :H, :in_size].set(wih.reshape(4, H, in_size).astype(jnp.float32)))
    u4 = (jnp.zeros((4, Hp, Hp), jnp.float32)
          .at[:, :H, :H].set(whh.reshape(4, H, H).astype(jnp.float32)))
    b4 = (jnp.zeros((4, Hp), jnp.float32)
          .at[:, :H].set((bih + bhh).reshape(4, H).astype(jnp.float32)))
    wih_t = w4.reshape(4 * Hp, Ip).T.astype(dtype)     # (Ip, 4Hp)
    whh_t = u4.reshape(4 * Hp, Hp).T.astype(dtype)     # (Hp, 4Hp)
    b = b4.reshape(1, 4 * Hp)                          # f32
    return wih_t, whh_t, b


def make_seq2seq(params, input_size, hidden_size, output_size,
                 compute_dtype=jnp.bfloat16):
    """Prepare (pad/transpose/fuse/cast) weights once; return a jit'ed forward."""
    assert input_size == hidden_size, "module requires input_size == hidden_size"
    H, I, O = hidden_size, input_size, output_size
    Hp = _round_up(H, 128)
    Ip = _round_up(I, 128)
    Op = _round_up(O, 128)

    wih_e, whh_e, b_e = _pack_lstm(params["wih_e"], params["whh_e"],
                                   params["bih_e"], params["bhh_e"],
                                   I, H, Ip, Hp, compute_dtype)
    wih_d, whh_d, b_d = _pack_lstm(params["wih_d"], params["whh_d"],
                                   params["bih_d"], params["bhh_d"],
                                   H, H, Hp, Hp, compute_dtype)
    wfc = (jnp.zeros((Op, Hp), jnp.float32)
           .at[:O, :H].set(params["wfc"].astype(jnp.float32))
           .T.astype(compute_dtype))                   # (Hp, Op)
    bfc = jnp.zeros((1, Op), jnp.float32).at[0, :O].set(params["bfc"])

    weights = (wih_e, whh_e, b_e, wih_d, whh_d, b_d, wfc, bfc)
    vmem = pl.BlockSpec(memory_space=pltpu.MemorySpace.VMEM)

    @jax.jit
    def forward(x):                                    # x: (T, B, I) f32
        T, B, I_ = x.shape
        Bp = max(8, _round_up(B, 8))                   # >= sublane width
        x_p = (jnp.zeros((T, Bp, Ip), compute_dtype)
               .at[:, :B, :I_].set(x.astype(compute_dtype))
               .reshape(T * Bp, Ip))
        out = pl.pallas_call(
            functools.partial(seq2seq_kernel, T=T, Bp=Bp),
            out_shape=jax.ShapeDtypeStruct((Bp, Op), jnp.float32),
            in_specs=[vmem] * 9,
            out_specs=vmem,
            compiler_params=pltpu.CompilerParams(
                vmem_limit_bytes=32 * 1024 * 1024),
        )(x_p, *weights)
        return out[:B, :O].reshape(1, B, O)

    return forward


# ------------------------------ pure-JAX reference ----------------------------
def _ref_forward(x, p):
    T, B, _ = x.shape
    H = p["whh_e"].shape[1]

    def cell(x_t, h, c, wih, whh, bih, bhh):
        g = x_t @ wih.T + bih + h @ whh.T + bhh
        i, f, gg, o = jnp.split(g, 4, axis=-1)
        c = jax.nn.sigmoid(f) * c + jax.nn.sigmoid(i) * jnp.tanh(gg)
        h = jax.nn.sigmoid(o) * jnp.tanh(c)
        return h, c

    h = jnp.zeros((B, H), jnp.float32)
    c = jnp.zeros((B, H), jnp.float32)
    for t in range(T):
        h, c = cell(x[t], h, c, p["wih_e"], p["whh_e"], p["bih_e"], p["bhh_e"])
    h_dec, _ = cell(x[-1], h, c, p["wih_d"], p["whh_d"], p["bih_d"], p["bhh_d"])
    return (h_dec @ p["wfc"].T + p["bfc"]).reshape(1, B, -1)


def init_params(key, input_size, hidden_size, output_size):
    """Deterministic init mimicking PyTorch's U(-1/sqrt(H), 1/sqrt(H))."""
    H, I, O = hidden_size, input_size, output_size
    k = 1.0 / jnp.sqrt(jnp.float32(H))
    keys = jax.random.split(key, 10)
    u = lambda kk, shape: jax.random.uniform(kk, shape, jnp.float32, -k, k)
    return {
        "wih_e": u(keys[0], (4 * H, I)),
        "whh_e": u(keys[1], (4 * H, H)),
        "bih_e": u(keys[2], (4 * H,)),
        "bhh_e": u(keys[3], (4 * H,)),
        "wih_d": u(keys[4], (4 * H, H)),
        "whh_d": u(keys[5], (4 * H, H)),
        "bih_d": u(keys[6], (4 * H,)),
        "bhh_d": u(keys[7], (4 * H,)),
        "wfc": u(keys[8], (O, H)),
        "bfc": u(keys[9], (O,)),
    }


if __name__ == "__main__":
    T, B = 8, 2
    input_size = hidden_size = 32   # module requires input_size == hidden_size
    output_size = 16

    key = jax.random.PRNGKey(0)
    k_x, k_p = jax.random.split(key)
    x = jax.random.normal(k_x, (T, B, input_size), jnp.float32)
    params = init_params(k_p, input_size, hidden_size, output_size)

    forward = make_seq2seq(params, input_size, hidden_size, output_size)
    out = jax.block_until_ready(forward(x))

    ref = _ref_forward(x, params)
    assert out.shape == (1, B, output_size)
    # bf16 weights/activations (f32 accumulation & state) vs. pure-f32 reference.
    assert jnp.allclose(out, ref, rtol=5e-2, atol=5e-2)

    print("KERNEL_OK")
</pallas_src>

<mosaic_0001>
module attributes {stable_mosaic.version = 11 : i64} {
  func.func @seq2seq_kernel(%arg0: memref<64x128xbf16, #tpu.memory_space<vmem>>, %arg1: memref<128x512xbf16, #tpu.memory_space<vmem>>, %arg2: memref<128x512xbf16, #tpu.memory_space<vmem>>, %arg3: memref<1x512xf32, #tpu.memory_space<vmem>>, %arg4: memref<128x512xbf16, #tpu.memory_space<vmem>>, %arg5: memref<128x512xbf16, #tpu.memory_space<vmem>>, %arg6: memref<1x512xf32, #tpu.memory_space<vmem>>, %arg7: memref<128x128xbf16, #tpu.memory_space<vmem>>, %arg8: memref<1x128xf32, #tpu.memory_space<vmem>>, %arg9: memref<8x128xf32, #tpu.memory_space<vmem>>) attributes {dimension_semantics = [], scalar_prefetch = 0 : i64, scratch_operands = 0 : i64, tpu.core_type = #tpu.core_type<tc>} {
    %c0 = arith.constant 0 : index
    %c0_0 = arith.constant 0 : index
    %0 = vector.load %arg0[%c0, %c0_0] : memref<64x128xbf16, #tpu.memory_space<vmem>>, vector<64x128xbf16>
    %c0_1 = arith.constant 0 : index
    %c0_2 = arith.constant 0 : index
    %1 = vector.load %arg2[%c0_1, %c0_2] : memref<128x512xbf16, #tpu.memory_space<vmem>>, vector<128x512xbf16>
    %c0_3 = arith.constant 0 : index
    %c0_4 = arith.constant 0 : index
    %2 = vector.load %arg5[%c0_3, %c0_4] : memref<128x512xbf16, #tpu.memory_space<vmem>>, vector<128x512xbf16>
    %c0_5 = arith.constant 0 : index
    %c0_6 = arith.constant 0 : index
    %3 = vector.load %arg1[%c0_5, %c0_6] : memref<128x512xbf16, #tpu.memory_space<vmem>>, vector<128x512xbf16>
    %cst = arith.constant dense<0.000000e+00> : vector<64x512xf32>
    %4 = tpu.matmul %0, %3, %cst {dimension_numbers = #tpu.dot_dimension_numbers<[1], [0], [0], [1], [0, 0, 1, 1], [], []>} : vector<64x128xbf16>, vector<128x512xbf16>, vector<64x512xf32> -> vector<64x512xf32>
    %c0_7 = arith.constant 0 : index
    %c0_8 = arith.constant 0 : index
    %5 = vector.load %arg3[%c0_7, %c0_8] : memref<1x512xf32, #tpu.memory_space<vmem>>, vector<1x512xf32>
    %6 = vector.broadcast %5 : vector<1x512xf32> to vector<64x512xf32>
    %7 = arith.addf %4, %6 : vector<64x512xf32>
    %8 = vector.extract_strided_slice %0 {offsets = [56, 0], sizes = [8, 128], strides = [1, 1]} : vector<64x128xbf16> to vector<8x128xbf16>
    %c0_9 = arith.constant 0 : index
    %c0_10 = arith.constant 0 : index
    %9 = vector.load %arg4[%c0_9, %c0_10] : memref<128x512xbf16, #tpu.memory_space<vmem>>, vector<128x512xbf16>
    %cst_11 = arith.constant dense<0.000000e+00> : vector<8x512xf32>
    %10 = tpu.matmul %8, %9, %cst_11 {dimension_numbers = #tpu.dot_dimension_numbers<[1], [0], [0], [1], [0, 0, 1, 1], [], []>} : vector<8x128xbf16>, vector<128x512xbf16>, vector<8x512xf32> -> vector<8x512xf32>
    %c0_12 = arith.constant 0 : index
    %c0_13 = arith.constant 0 : index
    %11 = vector.load %arg6[%c0_12, %c0_13] : memref<1x512xf32, #tpu.memory_space<vmem>>, vector<1x512xf32>
    %12 = vector.broadcast %11 : vector<1x512xf32> to vector<8x512xf32>
    %13 = arith.addf %10, %12 : vector<8x512xf32>
    %cst_14 = arith.constant 0.000000e+00 : f32
    %14 = vector.broadcast %cst_14 : f32 to vector<8x128xf32>
    %cst_15 = arith.constant 0.000000e+00 : f32
    %15 = vector.broadcast %cst_15 : f32 to vector<8x128xf32>
    %16 = vector.extract_strided_slice %7 {offsets = [0, 0], sizes = [8, 512], strides = [1, 1]} : vector<64x512xf32> to vector<8x512xf32>
    %17 = arith.truncf %14 : vector<8x128xf32> to vector<8x128xbf16>
    %cst_16 = arith.constant dense<0.000000e+00> : vector<8x512xf32>
    %18 = tpu.matmul %17, %1, %cst_16 {dimension_numbers = #tpu.dot_dimension_numbers<[1], [0], [0], [1], [0, 0, 1, 1], [], []>} : vector<8x128xbf16>, vector<128x512xbf16>, vector<8x512xf32> -> vector<8x512xf32>
    %19 = arith.addf %16, %18 : vector<8x512xf32>
    %20 = vector.extract_strided_slice %19 {offsets = [0, 0], sizes = [8, 128], strides = [1, 1]} : vector<8x512xf32> to vector<8x128xf32>
    %21 = arith.negf %20 : vector<8x128xf32>
    %22 = math.exp %21 : vector<8x128xf32>
    %cst_17 = arith.constant 1.000000e+00 : f32
    %23 = vector.broadcast %cst_17 : f32 to vector<8x128xf32>
    %24 = arith.addf %23, %22 : vector<8x128xf32>
    %25 = arith.divf %23, %24 : vector<8x128xf32>
    %26 = vector.extract_strided_slice %19 {offsets = [0, 128], sizes = [8, 128], strides = [1, 1]} : vector<8x512xf32> to vector<8x128xf32>
    %27 = arith.negf %26 : vector<8x128xf32>
    %28 = math.exp %27 : vector<8x128xf32>
    %cst_18 = arith.constant 1.000000e+00 : f32
    %29 = vector.broadcast %cst_18 : f32 to vector<8x128xf32>
    %30 = arith.addf %29, %28 : vector<8x128xf32>
    %31 = arith.divf %29, %30 : vector<8x128xf32>
    %32 = vector.extract_strided_slice %19 {offsets = [0, 256], sizes = [8, 128], strides = [1, 1]} : vector<8x512xf32> to vector<8x128xf32>
    %33 = math.tanh %32 : vector<8x128xf32>
    %34 = vector.extract_strided_slice %19 {offsets = [0, 384], sizes = [8, 128], strides = [1, 1]} : vector<8x512xf32> to vector<8x128xf32>
    %35 = arith.negf %34 : vector<8x128xf32>
    %36 = math.exp %35 : vector<8x128xf32>
    %cst_19 = arith.constant 1.000000e+00 : f32
    %37 = vector.broadcast %cst_19 : f32 to vector<8x128xf32>
    %38 = arith.addf %37, %36 : vector<8x128xf32>
    %39 = arith.divf %37, %38 : vector<8x128xf32>
    %40 = arith.mulf %31, %15 : vector<8x128xf32>
    %41 = arith.mulf %25, %33 : vector<8x128xf32>
    %42 = arith.addf %40, %41 : vector<8x128xf32>
    %43 = math.tanh %42 : vector<8x128xf32>
    %44 = arith.mulf %39, %43 : vector<8x128xf32>
    %45 = vector.extract_strided_slice %7 {offsets = [8, 0], sizes = [8, 512], strides = [1, 1]} : vector<64x512xf32> to vector<8x512xf32>
    %46 = arith.truncf %44 : vector<8x128xf32> to vector<8x128xbf16>
    %cst_20 = arith.constant dense<0.000000e+00> : vector<8x512xf32>
    %47 = tpu.matmul %46, %1, %cst_20 {dimension_numbers = #tpu.dot_dimension_numbers<[1], [0], [0], [1], [0, 0, 1, 1], [], []>} : vector<8x128xbf16>, vector<128x512xbf16>, vector<8x512xf32> -> vector<8x512xf32>
    %48 = arith.addf %45, %47 : vector<8x512xf32>
    %49 = vector.extract_strided_slice %48 {offsets = [0, 0], sizes = [8, 128], strides = [1, 1]} : vector<8x512xf32> to vector<8x128xf32>
    %50 = arith.negf %49 : vector<8x128xf32>
    %51 = math.exp %50 : vector<8x128xf32>
    %cst_21 = arith.constant 1.000000e+00 : f32
    %52 = vector.broadcast %cst_21 : f32 to vector<8x128xf32>
    %53 = arith.addf %52, %51 : vector<8x128xf32>
    %54 = arith.divf %52, %53 : vector<8x128xf32>
    %55 = vector.extract_strided_slice %48 {offsets = [0, 128], sizes = [8, 128], strides = [1, 1]} : vector<8x512xf32> to vector<8x128xf32>
    %56 = arith.negf %55 : vector<8x128xf32>
    %57 = math.exp %56 : vector<8x128xf32>
    %cst_22 = arith.constant 1.000000e+00 : f32
    %58 = vector.broadcast %cst_22 : f32 to vector<8x128xf32>
    %59 = arith.addf %58, %57 : vector<8x128xf32>
    %60 = arith.divf %58, %59 : vector<8x128xf32>
    %61 = vector.extract_strided_slice %48 {offsets = [0, 256], sizes = [8, 128], strides = [1, 1]} : vector<8x512xf32> to vector<8x128xf32>
    %62 = math.tanh %61 : vector<8x128xf32>
    %63 = vector.extract_strided_slice %48 {offsets = [0, 384], sizes = [8, 128], strides = [1, 1]} : vector<8x512xf32> to vector<8x128xf32>
    %64 = arith.negf %63 : vector<8x128xf32>
    %65 = math.exp %64 : vector<8x128xf32>
    %cst_23 = arith.constant 1.000000e+00 : f32
    %66 = vector.broadcast %cst_23 : f32 to vector<8x128xf32>
    %67 = arith.addf %66, %65 : vector<8x128xf32>
    %68 = arith.divf %66, %67 : vector<8x128xf32>
    %69 = arith.mulf %60, %42 : vector<8x128xf32>
    %70 = arith.mulf %54, %62 : vector<8x128xf32>
    %71 = arith.addf %69, %70 : vector<8x128xf32>
    %72 = math.tanh %71 : vector<8x128xf32>
    %73 = arith.mulf %68, %72 : vector<8x128xf32>
    %74 = vector.extract_strided_slice %7 {offsets = [16, 0], sizes = [8, 512], strides = [1, 1]} : vector<64x512xf32> to vector<8x512xf32>
    %75 = arith.truncf %73 : vector<8x128xf32> to vector<8x128xbf16>
    %cst_24 = arith.constant dense<0.000000e+00> : vector<8x512xf32>
    %76 = tpu.matmul %75, %1, %cst_24 {dimension_numbers = #tpu.dot_dimension_numbers<[1], [0], [0], [1], [0, 0, 1, 1], [], []>} : vector<8x128xbf16>, vector<128x512xbf16>, vector<8x512xf32> -> vector<8x512xf32>
    %77 = arith.addf %74, %76 : vector<8x512xf32>
    %78 = vector.extract_strided_slice %77 {offsets = [0, 0], sizes = [8, 128], strides = [1, 1]} : vector<8x512xf32> to vector<8x128xf32>
    %79 = arith.negf %78 : vector<8x128xf32>
    %80 = math.exp %79 : vector<8x128xf32>
    %cst_25 = arith.constant 1.000000e+00 : f32
    %81 = vector.broadcast %cst_25 : f32 to vector<8x128xf32>
    %82 = arith.addf %81, %80 : vector<8x128xf32>
    %83 = arith.divf %81, %82 : vector<8x128xf32>
    %84 = vector.extract_strided_slice %77 {offsets = [0, 128], sizes = [8, 128], strides = [1, 1]} : vector<8x512xf32> to vector<8x128xf32>
    %85 = arith.negf %84 : vector<8x128xf32>
    %86 = math.exp %85 : vector<8x128xf32>
    %cst_26 = arith.constant 1.000000e+00 : f32
    %87 = vector.broadcast %cst_26 : f32 to vector<8x128xf32>
    %88 = arith.addf %87, %86 : vector<8x128xf32>
    %89 = arith.divf %87, %88 : vector<8x128xf32>
    %90 = vector.extract_strided_slice %77 {offsets = [0, 256], sizes = [8, 128], strides = [1, 1]} : vector<8x512xf32> to vector<8x128xf32>
    %91 = math.tanh %90 : vector<8x128xf32>
    %92 = vector.extract_strided_slice %77 {offsets = [0, 384], sizes = [8, 128], strides = [1, 1]} : vector<8x512xf32> to vector<8x128xf32>
    %93 = arith.negf %92 : vector<8x128xf32>
    %94 = math.exp %93 : vector<8x128xf32>
    %cst_27 = arith.constant 1.000000e+00 : f32
    %95 = vector.broadcast %cst_27 : f32 to vector<8x128xf32>
    %96 = arith.addf %95, %94 : vector<8x128xf32>
    %97 = arith.divf %95, %96 : vector<8x128xf32>
    %98 = arith.mulf %89, %71 : vector<8x128xf32>
    %99 = arith.mulf %83, %91 : vector<8x128xf32>
    %100 = arith.addf %98, %99 : vector<8x128xf32>
    %101 = math.tanh %100 : vector<8x128xf32>
    %102 = arith.mulf %97, %101 : vector<8x128xf32>
    %103 = vector.extract_strided_slice %7 {offsets = [24, 0], sizes = [8, 512], strides = [1, 1]} : vector<64x512xf32> to vector<8x512xf32>
    %104 = arith.truncf %102 : vector<8x128xf32> to vector<8x128xbf16>
    %cst_28 = arith.constant dense<0.000000e+00> : vector<8x512xf32>
    %105 = tpu.matmul %104, %1, %cst_28 {dimension_numbers = #tpu.dot_dimension_numbers<[1], [0], [0], [1], [0, 0, 1, 1], [], []>} : vector<8x128xbf16>, vector<128x512xbf16>, vector<8x512xf32> -> vector<8x512xf32>
    %106 = arith.addf %103, %105 : vector<8x512xf32>
    %107 = vector.extract_strided_slice %106 {offsets = [0, 0], sizes = [8, 128], strides = [1, 1]} : vector<8x512xf32> to vector<8x128xf32>
    %108 = arith.negf %107 : vector<8x128xf32>
    %109 = math.exp %108 : vector<8x128xf32>
    %cst_29 = arith.constant 1.000000e+00 : f32
    %110 = vector.broadcast %cst_29 : f32 to vector<8x128xf32>
    %111 = arith.addf %110, %109 : vector<8x128xf32>
    %112 = arith.divf %110, %111 : vector<8x128xf32>
    %113 = vector.extract_strided_slice %106 {offsets = [0, 128], sizes = [8, 128], strides = [1, 1]} : vector<8x512xf32> to vector<8x128xf32>
    %114 = arith.negf %113 : vector<8x128xf32>
    %115 = math.exp %114 : vector<8x128xf32>
    %cst_30 = arith.constant 1.000000e+00 : f32
    %116 = vector.broadcast %cst_30 : f32 to vector<8x128xf32>
    %117 = arith.addf %116, %115 : vector<8x128xf32>
    %118 = arith.divf %116, %117 : vector<8x128xf32>
    %119 = vector.extract_strided_slice %106 {offsets = [0, 256], sizes = [8, 128], strides = [1, 1]} : vector<8x512xf32> to vector<8x128xf32>
    %120 = math.tanh %119 : vector<8x128xf32>
    %121 = vector.extract_strided_slice %106 {offsets = [0, 384], sizes = [8, 128], strides = [1, 1]} : vector<8x512xf32> to vector<8x128xf32>
    %122 = arith.negf %121 : vector<8x128xf32>
    %123 = math.exp %122 : vector<8x128xf32>
    %cst_31 = arith.constant 1.000000e+00 : f32
    %124 = vector.broadcast %cst_31 : f32 to vector<8x128xf32>
    %125 = arith.addf %124, %123 : vector<8x128xf32>
    %126 = arith.divf %124, %125 : vector<8x128xf32>
    %127 = arith.mulf %118, %100 : vector<8x128xf32>
    %128 = arith.mulf %112, %120 : vector<8x128xf32>
    %129 = arith.addf %127, %128 : vector<8x128xf32>
    %130 = math.tanh %129 : vector<8x128xf32>
    %131 = arith.mulf %126, %130 : vector<8x128xf32>
    %132 = vector.extract_strided_slice %7 {offsets = [32, 0], sizes = [8, 512], strides = [1, 1]} : vector<64x512xf32> to vector<8x512xf32>
    %133 = arith.truncf %131 : vector<8x128xf32> to vector<8x128xbf16>
    %cst_32 = arith.constant dense<0.000000e+00> : vector<8x512xf32>
    %134 = tpu.matmul %133, %1, %cst_32 {dimension_numbers = #tpu.dot_dimension_numbers<[1], [0], [0], [1], [0, 0, 1, 1], [], []>} : vector<8x128xbf16>, vector<128x512xbf16>, vector<8x512xf32> -> vector<8x512xf32>
    %135 = arith.addf %132, %134 : vector<8x512xf32>
    %136 = vector.extract_strided_slice %135 {offsets = [0, 0], sizes = [8, 128], strides = [1, 1]} : vector<8x512xf32> to vector<8x128xf32>
    %137 = arith.negf %136 : vector<8x128xf32>
    %138 = math.exp %137 : vector<8x128xf32>
    %cst_33 = arith.constant 1.000000e+00 : f32
    %139 = vector.broadcast %cst_33 : f32 to vector<8x128xf32>
    %140 = arith.addf %139, %138 : vector<8x128xf32>
    %141 = arith.divf %139, %140 : vector<8x128xf32>
    %142 = vector.extract_strided_slice %135 {offsets = [0, 128], sizes = [8, 128], strides = [1, 1]} : vector<8x512xf32> to vector<8x128xf32>
    %143 = arith.negf %142 : vector<8x128xf32>
    %144 = math.exp %143 : vector<8x128xf32>
    %cst_34 = arith.constant 1.000000e+00 : f32
    %145 = vector.broadcast %cst_34 : f32 to vector<8x128xf32>
    %146 = arith.addf %145, %144 : vector<8x128xf32>
    %147 = arith.divf %145, %146 : vector<8x128xf32>
    %148 = vector.extract_strided_slice %135 {offsets = [0, 256], sizes = [8, 128], strides = [1, 1]} : vector<8x512xf32> to vector<8x128xf32>
    %149 = math.tanh %148 : vector<8x128xf32>
    %150 = vector.extract_strided_slice %135 {offsets = [0, 384], sizes = [8, 128], strides = [1, 1]} : vector<8x512xf32> to vector<8x128xf32>
    %151 = arith.negf %150 : vector<8x128xf32>
    %152 = math.exp %151 : vector<8x128xf32>
    %cst_35 = arith.constant 1.000000e+00 : f32
    %153 = vector.broadcast %cst_35 : f32 to vector<8x128xf32>
    %154 = arith.addf %153, %152 : vector<8x128xf32>
    %155 = arith.divf %153, %154 : vector<8x128xf32>
    %156 = arith.mulf %147, %129 : vector<8x128xf32>
    %157 = arith.mulf %141, %149 : vector<8x128xf32>
    %158 = arith.addf %156, %157 : vector<8x128xf32>
    %159 = math.tanh %158 : vector<8x128xf32>
    %160 = arith.mulf %155, %159 : vector<8x128xf32>
    %161 = vector.extract_strided_slice %7 {offsets = [40, 0], sizes = [8, 512], strides = [1, 1]} : vector<64x512xf32> to vector<8x512xf32>
    %162 = arith.truncf %160 : vector<8x128xf32> to vector<8x128xbf16>
    %cst_36 = arith.constant dense<0.000000e+00> : vector<8x512xf32>
    %163 = tpu.matmul %162, %1, %cst_36 {dimension_numbers = #tpu.dot_dimension_numbers<[1], [0], [0], [1], [0, 0, 1, 1], [], []>} : vector<8x128xbf16>, vector<128x512xbf16>, vector<8x512xf32> -> vector<8x512xf32>
    %164 = arith.addf %161, %163 : vector<8x512xf32>
    %165 = vector.extract_strided_slice %164 {offsets = [0, 0], sizes = [8, 128], strides = [1, 1]} : vector<8x512xf32> to vector<8x128xf32>
    %166 = arith.negf %165 : vector<8x128xf32>
    %167 = math.exp %166 : vector<8x128xf32>
    %cst_37 = arith.constant 1.000000e+00 : f32
    %168 = vector.broadcast %cst_37 : f32 to vector<8x128xf32>
    %169 = arith.addf %168, %167 : vector<8x128xf32>
    %170 = arith.divf %168, %169 : vector<8x128xf32>
    %171 = vector.extract_strided_slice %164 {offsets = [0, 128], sizes = [8, 128], strides = [1, 1]} : vector<8x512xf32> to vector<8x128xf32>
    %172 = arith.negf %171 : vector<8x128xf32>
    %173 = math.exp %172 : vector<8x128xf32>
    %cst_38 = arith.constant 1.000000e+00 : f32
    %174 = vector.broadcast %cst_38 : f32 to vector<8x128xf32>
    %175 = arith.addf %174, %173 : vector<8x128xf32>
    %176 = arith.divf %174, %175 : vector<8x128xf32>
    %177 = vector.extract_strided_slice %164 {offsets = [0, 256], sizes = [8, 128], strides = [1, 1]} : vector<8x512xf32> to vector<8x128xf32>
    %178 = math.tanh %177 : vector<8x128xf32>
    %179 = vector.extract_strided_slice %164 {offsets = [0, 384], sizes = [8, 128], strides = [1, 1]} : vector<8x512xf32> to vector<8x128xf32>
    %180 = arith.negf %179 : vector<8x128xf32>
    %181 = math.exp %180 : vector<8x128xf32>
    %cst_39 = arith.constant 1.000000e+00 : f32
    %182 = vector.broadcast %cst_39 : f32 to vector<8x128xf32>
    %183 = arith.addf %182, %181 : vector<8x128xf32>
    %184 = arith.divf %182, %183 : vector<8x128xf32>
    %185 = arith.mulf %176, %158 : vector<8x128xf32>
    %186 = arith.mulf %170, %178 : vector<8x128xf32>
    %187 = arith.addf %185, %186 : vector<8x128xf32>
    %188 = math.tanh %187 : vector<8x128xf32>
    %189 = arith.mulf %184, %188 : vector<8x128xf32>
    %190 = vector.extract_strided_slice %7 {offsets = [48, 0], sizes = [8, 512], strides = [1, 1]} : vector<64x512xf32> to vector<8x512xf32>
    %191 = arith.truncf %189 : vector<8x128xf32> to vector<8x128xbf16>
    %cst_40 = arith.constant dense<0.000000e+00> : vector<8x512xf32>
    %192 = tpu.matmul %191, %1, %cst_40 {dimension_numbers = #tpu.dot_dimension_numbers<[1], [0], [0], [1], [0, 0, 1, 1], [], []>} : vector<8x128xbf16>, vector<128x512xbf16>, vector<8x512xf32> -> vector<8x512xf32>
    %193 = arith.addf %190, %192 : vector<8x512xf32>
    %194 = vector.extract_strided_slice %193 {offsets = [0, 0], sizes = [8, 128], strides = [1, 1]} : vector<8x512xf32> to vector<8x128xf32>
    %195 = arith.negf %194 : vector<8x128xf32>
    %196 = math.exp %195 : vector<8x128xf32>
    %cst_41 = arith.constant 1.000000e+00 : f32
    %197 = vector.broadcast %cst_41 : f32 to vector<8x128xf32>
    %198 = arith.addf %197, %196 : vector<8x128xf32>
    %199 = arith.divf %197, %198 : vector<8x128xf32>
    %200 = vector.extract_strided_slice %193 {offsets = [0, 128], sizes = [8, 128], strides = [1, 1]} : vector<8x512xf32> to vector<8x128xf32>
    %201 = arith.negf %200 : vector<8x128xf32>
    %202 = math.exp %201 : vector<8x128xf32>
    %cst_42 = arith.constant 1.000000e+00 : f32
    %203 = vector.broadcast %cst_42 : f32 to vector<8x128xf32>
    %204 = arith.addf %203, %202 : vector<8x128xf32>
    %205 = arith.divf %203, %204 : vector<8x128xf32>
    %206 = vector.extract_strided_slice %193 {offsets = [0, 256], sizes = [8, 128], strides = [1, 1]} : vector<8x512xf32> to vector<8x128xf32>
    %207 = math.tanh %206 : vector<8x128xf32>
    %208 = vector.extract_strided_slice %193 {offsets = [0, 384], sizes = [8, 128], strides = [1, 1]} : vector<8x512xf32> to vector<8x128xf32>
    %209 = arith.negf %208 : vector<8x128xf32>
    %210 = math.exp %209 : vector<8x128xf32>
    %cst_43 = arith.constant 1.000000e+00 : f32
    %211 = vector.broadcast %cst_43 : f32 to vector<8x128xf32>
    %212 = arith.addf %211, %210 : vector<8x128xf32>
    %213 = arith.divf %211, %212 : vector<8x128xf32>
    %214 = arith.mulf %205, %187 : vector<8x128xf32>
    %215 = arith.mulf %199, %207 : vector<8x128xf32>
    %216 = arith.addf %214, %215 : vector<8x128xf32>
    %217 = math.tanh %216 : vector<8x128xf32>
    %218 = arith.mulf %213, %217 : vector<8x128xf32>
    %219 = vector.extract_strided_slice %7 {offsets = [56, 0], sizes = [8, 512], strides = [1, 1]} : vector<64x512xf32> to vector<8x512xf32>
    %220 = arith.truncf %218 : vector<8x128xf32> to vector<8x128xbf16>
    %cst_44 = arith.constant dense<0.000000e+00> : vector<8x512xf32>
    %221 = tpu.matmul %220, %1, %cst_44 {dimension_numbers = #tpu.dot_dimension_numbers<[1], [0], [0], [1], [0, 0, 1, 1], [], []>} : vector<8x128xbf16>, vector<128x512xbf16>, vector<8x512xf32> -> vector<8x512xf32>
    %222 = arith.addf %219, %221 : vector<8x512xf32>
    %223 = vector.extract_strided_slice %222 {offsets = [0, 0], sizes = [8, 128], strides = [1, 1]} : vector<8x512xf32> to vector<8x128xf32>
    %224 = arith.negf %223 : vector<8x128xf32>
    %225 = math.exp %224 : vector<8x128xf32>
    %cst_45 = arith.constant 1.000000e+00 : f32
    %226 = vector.broadcast %cst_45 : f32 to vector<8x128xf32>
    %227 = arith.addf %226, %225 : vector<8x128xf32>
    %228 = arith.divf %226, %227 : vector<8x128xf32>
    %229 = vector.extract_strided_slice %222 {offsets = [0, 128], sizes = [8, 128], strides = [1, 1]} : vector<8x512xf32> to vector<8x128xf32>
    %230 = arith.negf %229 : vector<8x128xf32>
    %231 = math.exp %230 : vector<8x128xf32>
    %cst_46 = arith.constant 1.000000e+00 : f32
    %232 = vector.broadcast %cst_46 : f32 to vector<8x128xf32>
    %233 = arith.addf %232, %231 : vector<8x128xf32>
    %234 = arith.divf %232, %233 : vector<8x128xf32>
    %235 = vector.extract_strided_slice %222 {offsets = [0, 256], sizes = [8, 128], strides = [1, 1]} : vector<8x512xf32> to vector<8x128xf32>
    %236 = math.tanh %235 : vector<8x128xf32>
    %237 = vector.extract_strided_slice %222 {offsets = [0, 384], sizes = [8, 128], strides = [1, 1]} : vector<8x512xf32> to vector<8x128xf32>
    %238 = arith.negf %237 : vector<8x128xf32>
    %239 = math.exp %238 : vector<8x128xf32>
    %cst_47 = arith.constant 1.000000e+00 : f32
    %240 = vector.broadcast %cst_47 : f32 to vector<8x128xf32>
    %241 = arith.addf %240, %239 : vector<8x128xf32>
    %242 = arith.divf %240, %241 : vector<8x128xf32>
    %243 = arith.mulf %234, %216 : vector<8x128xf32>
    %244 = arith.mulf %228, %236 : vector<8x128xf32>
    %245 = arith.addf %243, %244 : vector<8x128xf32>
    %246 = math.tanh %245 : vector<8x128xf32>
    %247 = arith.mulf %242, %246 : vector<8x128xf32>
    %248 = arith.truncf %247 : vector<8x128xf32> to vector<8x128xbf16>
    %cst_48 = arith.constant dense<0.000000e+00> : vector<8x512xf32>
    %249 = tpu.matmul %248, %2, %cst_48 {dimension_numbers = #tpu.dot_dimension_numbers<[1], [0], [0], [1], [0, 0, 1, 1], [], []>} : vector<8x128xbf16>, vector<128x512xbf16>, vector<8x512xf32> -> vector<8x512xf32>
    %250 = arith.addf %13, %249 : vector<8x512xf32>
    %251 = vector.extract_strided_slice %250 {offsets = [0, 0], sizes = [8, 128], strides = [1, 1]} : vector<8x512xf32> to vector<8x128xf32>
    %252 = arith.negf %251 : vector<8x128xf32>
    %253 = math.exp %252 : vector<8x128xf32>
    %cst_49 = arith.constant 1.000000e+00 : f32
    %254 = vector.broadcast %cst_49 : f32 to vector<8x128xf32>
    %255 = arith.addf %254, %253 : vector<8x128xf32>
    %256 = arith.divf %254, %255 : vector<8x128xf32>
    %257 = vector.extract_strided_slice %250 {offsets = [0, 128], sizes = [8, 128], strides = [1, 1]} : vector<8x512xf32> to vector<8x128xf32>
    %258 = arith.negf %257 : vector<8x128xf32>
    %259 = math.exp %258 : vector<8x128xf32>
    %cst_50 = arith.constant 1.000000e+00 : f32
    %260 = vector.broadcast %cst_50 : f32 to vector<8x128xf32>
    %261 = arith.addf %260, %259 : vector<8x128xf32>
    %262 = arith.divf %260, %261 : vector<8x128xf32>
    %263 = vector.extract_strided_slice %250 {offsets = [0, 256], sizes = [8, 128], strides = [1, 1]} : vector<8x512xf32> to vector<8x128xf32>
    %264 = math.tanh %263 : vector<8x128xf32>
    %265 = vector.extract_strided_slice %250 {offsets = [0, 384], sizes = [8, 128], strides = [1, 1]} : vector<8x512xf32> to vector<8x128xf32>
    %266 = arith.negf %265 : vector<8x128xf32>
    %267 = math.exp %266 : vector<8x128xf32>
    %cst_51 = arith.constant 1.000000e+00 : f32
    %268 = vector.broadcast %cst_51 : f32 to vector<8x128xf32>
    %269 = arith.addf %268, %267 : vector<8x128xf32>
    %270 = arith.divf %268, %269 : vector<8x128xf32>
    %271 = arith.mulf %262, %245 : vector<8x128xf32>
    %272 = arith.mulf %256, %264 : vector<8x128xf32>
    %273 = arith.addf %271, %272 : vector<8x128xf32>
    %274 = math.tanh %273 : vector<8x128xf32>
    %275 = arith.mulf %270, %274 : vector<8x128xf32>
    %276 = arith.truncf %275 : vector<8x128xf32> to vector<8x128xbf16>
    %c0_52 = arith.constant 0 : index
    %c0_53 = arith.constant 0 : index
    %277 = vector.load %arg7[%c0_52, %c0_53] : memref<128x128xbf16, #tpu.memory_space<vmem>>, vector<128x128xbf16>
    %cst_54 = arith.constant dense<0.000000e+00> : vector<8x128xf32>
    %278 = tpu.matmul %276, %277, %cst_54 {dimension_numbers = #tpu.dot_dimension_numbers<[1], [0], [0], [1], [0, 0, 1, 1], [], []>} : vector<8x128xbf16>, vector<128x128xbf16>, vector<8x128xf32> -> vector<8x128xf32>
    %c0_55 = arith.constant 0 : index
    %c0_56 = arith.constant 0 : index
    %279 = vector.load %arg8[%c0_55, %c0_56] : memref<1x128xf32, #tpu.memory_space<vmem>>, vector<1x128xf32>
    %280 = vector.broadcast %279 : vector<1x128xf32> to vector<8x128xf32>
    %281 = arith.addf %278, %280 : vector<8x128xf32>
    %c0_57 = arith.constant 0 : index
    %c0_58 = arith.constant 0 : index
    %282 = vector.load %arg9[%c0_57, %c0_58] : memref<8x128xf32, #tpu.memory_space<vmem>>, vector<8x128xf32>
    tpu.vector_store %arg9[%c0_57, %c0_58], %281 {strides = array<i32>} : memref<8x128xf32, #tpu.memory_space<vmem>>, vector<8x128xf32>,
    return
  }
}

</mosaic_0001>

<llo_original>
// kernel: forward.1
$region0: #{forward.1}
  #allocation0 [shape = 'u32[]', space=smem, size = 0x4, offset = 0x4, fixed_abs, tag = 'smem constant byte address 0x4 - core index']
  #allocation1 [shape = 'u32[72,128]{1,0:T(1,128)}', space=vmem, size = 0x9000, scoped, tag = 'internal scratch']
  %s0 = inlined_call_operand.vmem [shape: bf16[64,128], index: 0, kind: input, shape index: {}]
  %s1 = inlined_call_operand.hbm [shape: bf16[128,512], index: 1, kind: input, shape index: {}]
  %s2 = inlined_call_operand.hbm [shape: bf16[128,512], index: 2, kind: input, shape index: {}]
  %s3 = inlined_call_operand.hbm [shape: f32[1,512], index: 3, kind: input, shape index: {}]
  %s4 = inlined_call_operand.hbm [shape: bf16[128,512], index: 4, kind: input, shape index: {}]
  %s5 = inlined_call_operand.hbm [shape: bf16[128,512], index: 5, kind: input, shape index: {}]
  %s6 = inlined_call_operand.vmem [shape: f32[1,512], index: 6, kind: input, shape index: {}]
  %s7 = inlined_call_operand.vmem [shape: bf16[128,128], index: 7, kind: input, shape index: {}]
  %s8 = inlined_call_operand.vmem [shape: f32[1,128], index: 8, kind: input, shape index: {}]
  %s9 = inlined_call_operand.vmem [shape: f32[8,128], index: 9, kind: output, shape index: {}]
  %s10 = sld [smem:[#allocation0]]
  $region66: #{forward.1} parent=0
    _
  %s12 = ssub.s32 1, %s10
  %s13 = scalar_select 0, %s12, %s10
  $region1: #{forward.1} parent=0
    #allocation2 [shape = 'u8[131072]{0}', space=vmem, size = 0x20000, scoped, tag = 'input window, operand 1, single buffered']
    #allocation3 [shape = 's32[1]{0}', space=sflag, size = 0x4, scoped, tag = 'scoped memory for forward.1']
    #allocation4 [shape = 'u8[131072]{0}', space=vmem, size = 0x20000, scoped, tag = 'input window, operand 2, single buffered']
    #allocation5 [shape = 's32[1]{0}', space=sflag, size = 0x4, scoped, tag = 'scoped memory for forward.1']
    #allocation6 [shape = 'u8[2048]{0}', space=vmem, size = 0x800, scoped, tag = 'input window, operand 3, single buffered']
    #allocation7 [shape = 'u8[131072]{0}', space=vmem, size = 0x20000, scoped, tag = 'input window, operand 4, single buffered']
    #allocation8 [shape = 's32[1]{0}', space=sflag, size = 0x4, scoped, tag = 'scoped memory for forward.1']
    #allocation9 [shape = 'u8[131072]{0}', space=vmem, size = 0x20000, scoped, tag = 'input window, operand 5, single buffered']
    %14 = vsyncpa [#allocation3], 0
    %15 = vsyncpa [#allocation5], 0
    %16 = vsyncpa [#allocation8], 0
    // Predicated region
    $region2: #{forward.1} parent=1 // pred_check
      _
    $region3: #{forward.1} parent=1 // pred_check_branch
      %18 = sbr.rel (0) target = $region5
    $region4: #{forward.1} parent=1 // pred_region
      _
    $region5: #{forward.1} parent=1 // pred_fallthru
      _
    // Predicated region
    $region6: #{forward.1} parent=1 // pred_check
      _
    $region7: #{forward.1} parent=1 // pred_check_branch
      %20 = sbr.rel (0) target = $region9
    $region8: #{forward.1} parent=1 // pred_region
      %22 = vsyncadd [#allocation3], 0
      %s23 = sshll.u32 %s1, 4
      %s24 = int_to_ptr.hbm [resolvable:$true] %s23
      %s25 = sshll.u32 [#allocation2], 4
      %s26 = int_to_ptr.vmem [resolvable:$true] %s25
      %31 = dma.hbm_to_vmem [thread:$0]  %s24, 4096, %s26, [#allocation3], 256, 256, 16
    $region9: #{forward.1} parent=1 // pred_fallthru
      _
    // Predicated region
    $region10: #{forward.1} parent=1 // pred_check
      _
    $region11: #{forward.1} parent=1 // pred_check_branch
      %33 = sbr.rel (0) target = $region13
    $region12: #{forward.1} parent=1 // pred_region
      %35 = vsyncadd [#allocation5], 0
      %s36 = sshll.u32 %s2, 4
      %s37 = int_to_ptr.hbm [resolvable:$true] %s36
      %s38 = sshll.u32 [#allocation4], 4
      %s39 = int_to_ptr.vmem [resolvable:$true] %s38
      %44 = dma.hbm_to_vmem [thread:$0]  %s37, 4096, %s39, [#allocation5], 256, 256, 16
    $region13: #{forward.1} parent=1 // pred_fallthru
      _
    // Predicated region
    $region14: #{forward.1} parent=1 // pred_check
      _
    $region15: #{forward.1} parent=1 // pred_check_branch
      %46 = sbr.rel (0) target = $region17
    $region16: #{forward.1} parent=1 // pred_region
      %48 = vsyncadd [#allocation5], 0
      %s50 = sshll.u32 %s3, 4
      %s51 = int_to_ptr.hbm [resolvable:$true] %s50
      %s52 = sshll.u32 [#allocation6], 4
      %s53 = int_to_ptr.vmem [resolvable:$true] %s52
      %55 = dma.hbm_to_vmem [thread:$0]  %s51, 64, %s53, [#allocation5]
    $region17: #{forward.1} parent=1 // pred_fallthru
      _
    // Predicated region
    $region18: #{forward.1} parent=1 // pred_check
      _
    $region19: #{forward.1} parent=1 // pred_check_branch
      %57 = sbr.rel (0) target = $region21
    $region20: #{forward.1} parent=1 // pred_region
      %59 = vsyncadd [#allocation8], 0
      %s60 = sshll.u32 %s4, 4
      %s61 = int_to_ptr.hbm [resolvable:$true] %s60
      %s62 = sshll.u32 [#allocation7], 4
      %s63 = int_to_ptr.vmem [resolvable:$true] %s62
      %68 = dma.hbm_to_vmem [thread:$0]  %s61, 4096, %s63, [#allocation8], 256, 256, 16
    $region21: #{forward.1} parent=1 // pred_fallthru
      _
    // Predicated region
    $region22: #{forward.1} parent=1 // pred_check
      _
    $region23: #{forward.1} parent=1 // pred_check_branch
      %70 = sbr.rel (0) target = $region25
    $region24: #{forward.1} parent=1 // pred_region
      %72 = vsyncadd [#allocation8], 0
      %s73 = sshll.u32 %s5, 4
      %s74 = int_to_ptr.hbm [resolvable:$true] %s73
      %s75 = sshll.u32 [#allocation9], 4
      %s76 = int_to_ptr.vmem [resolvable:$true] %s75
      %81 = dma.hbm_to_vmem [thread:$0]  %s74, 4096, %s76, [#allocation8], 256, 256, 16
    $region25: #{forward.1} parent=1 // pred_fallthru
      _
    // Predicated region
    $region26: #{forward.1} parent=1 // pred_check
      _
    $region27: #{forward.1} parent=1 // pred_check_branch
      %83 = sbr.rel (0) target = $region29
    $region28: #{forward.1} parent=1 // pred_region
      _
    $region29: #{forward.1} parent=1 // pred_fallthru
      _
    // Predicated region
    $region30: #{forward.1} parent=1 // pred_check
      _
    $region31: #{forward.1} parent=1 // pred_check_branch
      %85 = sbr.rel (0) target = $region33
    $region32: #{forward.1} parent=1 // pred_region
      _
    $region33: #{forward.1} parent=1 // pred_fallthru
      _
    // Predicated region
    $region34: #{forward.1} parent=1 // pred_check
      _
    $region35: #{forward.1} parent=1 // pred_check_branch
      %87 = sbr.rel (0) target = $region37
    $region36: #{forward.1} parent=1 // pred_region
      _
    $region37: #{forward.1} parent=1 // pred_fallthru
      _
    // Predicated region
    $region38: #{forward.1} parent=1 // pred_check
      _
    $region39: #{forward.1} parent=1 // pred_check_branch
      %89 = sbr.rel (0) target = $region41
    $region40: #{forward.1} parent=1 // pred_region
      %91 = dma.done [#allocation3], 4096
    $region41: #{forward.1} parent=1 // pred_fallthru
      _
    // Predicated region
    $region42: #{forward.1} parent=1 // pred_check
      _
    $region43: #{forward.1} parent=1 // pred_check_branch
      %93 = sbr.rel (0) target = $region45
    $region44: #{forward.1} parent=1 // pred_region
      %95 = dma.done [#allocation5], 4096
    $region45: #{forward.1} parent=1 // pred_fallthru
      _
    // Predicated region
    $region46: #{forward.1} parent=1 // pred_check
      _
    $region47: #{forward.1} parent=1 // pred_check_branch
      %97 = sbr.rel (0) target = $region49
    $region48: #{forward.1} parent=1 // pred_region
      %99 = dma.done [#allocation5], 64
    $region49: #{forward.1} parent=1 // pred_fallthru
      _
    // Predicated region
    $region50: #{forward.1} parent=1 // pred_check
      _
    $region51: #{forward.1} parent=1 // pred_check_branch
      %101 = sbr.rel (0) target = $region53
    $region52: #{forward.1} parent=1 // pred_region
      %103 = dma.done [#allocation8], 4096
    $region53: #{forward.1} parent=1 // pred_fallthru
      _
    // Predicated region
    $region54: #{forward.1} parent=1 // pred_check
      _
    $region55: #{forward.1} parent=1 // pred_check_branch
      %105 = sbr.rel (0) target = $region57
    $region56: #{forward.1} parent=1 // pred_region
      %107 = dma.done [#allocation8], 4096
    $region57: #{forward.1} parent=1 // pred_fallthru
      _
    %v109 = vld [vmem:[%s0] sm:$0xf]
    %v110 = vld [vmem:[%s0 + $0x4] sm:$0xf]
    %v111 = vld [vmem:[%s0 + $0x8] sm:$0xf]
    %v112 = vld [vmem:[%s0 + $0xc] sm:$0xf]
    %v113 = vld [vmem:[%s0 + $0x10] sm:$0xf]
    %v114 = vld [vmem:[%s0 + $0x14] sm:$0xf]
    %v115 = vld [vmem:[%s0 + $0x18] sm:$0xf]
    %v116 = vld [vmem:[%s0 + $0x1c] sm:$0xf]
    %v117 = vld [vmem:[#allocation4] sm:$0xff]
    %v118 = vld [vmem:[#allocation4 + $0x8] sm:$0xff]
    %v119 = vld [vmem:[#allocation4 + $0x10] sm:$0xff]
    %v120 = vld [vmem:[#allocation4 + $0x18] sm:$0xff]
    %v121 = vld [vmem:[#allocation4 + $0x20] sm:$0xff]
    %v122 = vld [vmem:[#allocation4 + $0x28] sm:$0xff]
    %v123 = vld [vmem:[#allocation4 + $0x30] sm:$0xff]
    %v124 = vld [vmem:[#allocation4 + $0x38] sm:$0xff]
    %v125 = vld [vmem:[#allocation4 + $0x40] sm:$0xff]
    %v126 = vld [vmem:[#allocation4 + $0x48] sm:$0xff]
    %v127 = vld [vmem:[#allocation4 + $0x50] sm:$0xff]
    %v128 = vld [vmem:[#allocation4 + $0x58] sm:$0xff]
    %v129 = vld [vmem:[#allocation4 + $0x60] sm:$0xff]
    %v130 = vld [vmem:[#allocation4 + $0x68] sm:$0xff]
    %v131 = vld [vmem:[#allocation4 + $0x70] sm:$0xff]
    %v132 = vld [vmem:[#allocation4 + $0x78] sm:$0xff]
    %v133 = vld [vmem:[#allocation4 + $0x80] sm:$0xff]
    %v134 = vld [vmem:[#allocation4 + $0x88] sm:$0xff]
    %v135 = vld [vmem:[#allocation4 + $0x90] sm:$0xff]
    %v136 = vld [vmem:[#allocation4 + $0x98] sm:$0xff]
    %v137 = vld [vmem:[#allocation4 + $0xa0] sm:$0xff]
    %v138 = vld [vmem:[#allocation4 + $0xa8] sm:$0xff]
    %v139 = vld [vmem:[#allocation4 + $0xb0] sm:$0xff]
    %v140 = vld [vmem:[#allocation4 + $0xb8] sm:$0xff]
    %v141 = vld [vmem:[#allocation4 + $0xc0] sm:$0xff]
    %v142 = vld [vmem:[#allocation4 + $0xc8] sm:$0xff]
    %v143 = vld [vmem:[#allocation4 + $0xd0] sm:$0xff]
    %v144 = vld [vmem:[#allocation4 + $0xd8] sm:$0xff]
    %v145 = vld [vmem:[#allocation4 + $0xe0] sm:$0xff]
    %v146 = vld [vmem:[#allocation4 + $0xe8] sm:$0xff]
    %v147 = vld [vmem:[#allocation4 + $0xf0] sm:$0xff]
    %v148 = vld [vmem:[#allocation4 + $0xf8] sm:$0xff]
    %v149 = vld [vmem:[#allocation9] sm:$0xff]
    %v150 = vld [vmem:[#allocation9 + $0x8] sm:$0xff]
    %v151 = vld [vmem:[#allocation9 + $0x10] sm:$0xff]
    %v152 = vld [vmem:[#allocation9 + $0x18] sm:$0xff]
    %v153 = vld [vmem:[#allocation9 + $0x20] sm:$0xff]
    %v154 = vld [vmem:[#allocation9 + $0x28] sm:$0xff]
    %v155 = vld [vmem:[#allocation9 + $0x30] sm:$0xff]
    %v156 = vld [vmem:[#allocation9 + $0x38] sm:$0xff]
    %v157 = vld [vmem:[#allocation9 + $0x40] sm:$0xff]
    %v158 = vld [vmem:[#allocation9 + $0x48] sm:$0xff]
    %v159 = vld [vmem:[#allocation9 + $0x50] sm:$0xff]
    %v160 = vld [vmem:[#allocation9 + $0x58] sm:$0xff]
    %v161 = vld [vmem:[#allocation9 + $0x60] sm:$0xff]
    %v162 = vld [vmem:[#allocation9 + $0x68] sm:$0xff]
    %v163 = vld [vmem:[#allocation9 + $0x70] sm:$0xff]
    %v164 = vld [vmem:[#allocation9 + $0x78] sm:$0xff]
    %v165 = vld [vmem:[#allocation9 + $0x80] sm:$0xff]
    %v166 = vld [vmem:[#allocation9 + $0x88] sm:$0xff]
    %v167 = vld [vmem:[#allocation9 + $0x90] sm:$0xff]
    %v168 = vld [vmem:[#allocation9 + $0x98] sm:$0xff]
    %v169 = vld [vmem:[#allocation9 + $0xa0] sm:$0xff]
    %v170 = vld [vmem:[#allocation9 + $0xa8] sm:$0xff]
    %v171 = vld [vmem:[#allocation9 + $0xb0] sm:$0xff]
    %v172 = vld [vmem:[#allocation9 + $0xb8] sm:$0xff]
    %v173 = vld [vmem:[#allocation9 + $0xc0] sm:$0xff]
    %v174 = vld [vmem:[#allocation9 + $0xc8] sm:$0xff]
    %v175 = vld [vmem:[#allocation9 + $0xd0] sm:$0xff]
    %v176 = vld [vmem:[#allocation9 + $0xd8] sm:$0xff]
    %v177 = vld [vmem:[#allocation9 + $0xe0] sm:$0xff]
    %v178 = vld [vmem:[#allocation9 + $0xe8] sm:$0xff]
    %v179 = vld [vmem:[#allocation9 + $0xf0] sm:$0xff]
    %v180 = vld [vmem:[#allocation9 + $0xf8] sm:$0xff]
    %v181 = vld [vmem:[#allocation2] sm:$0xff]
    %v182 = vld [vmem:[#allocation2 + $0x8] sm:$0xff]
    %v183 = vld [vmem:[#allocation2 + $0x10] sm:$0xff]
    %v184 = vld [vmem:[#allocation2 + $0x18] sm:$0xff]
    %v185 = vld [vmem:[#allocation2 + $0x20] sm:$0xff]
    %v186 = vld [vmem:[#allocation2 + $0x28] sm:$0xff]
    %v187 = vld [vmem:[#allocation2 + $0x30] sm:$0xff]
    %v188 = vld [vmem:[#allocation2 + $0x38] sm:$0xff]
    %v189 = vld [vmem:[#allocation2 + $0x40] sm:$0xff]
    %v190 = vld [vmem:[#allocation2 + $0x48] sm:$0xff]
    %v191 = vld [vmem:[#allocation2 + $0x50] sm:$0xff]
    %v192 = vld [vmem:[#allocation2 + $0x58] sm:$0xff]
    %v193 = vld [vmem:[#allocation2 + $0x60] sm:$0xff]
    %v194 = vld [vmem:[#allocation2 + $0x68] sm:$0xff]
    %v195 = vld [vmem:[#allocation2 + $0x70] sm:$0xff]
    %v196 = vld [vmem:[#allocation2 + $0x78] sm:$0xff]
    %v197 = vld [vmem:[#allocation2 + $0x80] sm:$0xff]
    %v198 = vld [vmem:[#allocation2 + $0x88] sm:$0xff]
    %v199 = vld [vmem:[#allocation2 + $0x90] sm:$0xff]
    %v200 = vld [vmem:[#allocation2 + $0x98] sm:$0xff]
    %v201 = vld [vmem:[#allocation2 + $0xa0] sm:$0xff]
    %v202 = vld [vmem:[#allocation2 + $0xa8] sm:$0xff]
    %v203 = vld [vmem:[#allocation2 + $0xb0] sm:$0xff]
    %v204 = vld [vmem:[#allocation2 + $0xb8] sm:$0xff]
    %v205 = vld [vmem:[#allocation2 + $0xc0] sm:$0xff]
    %v206 = vld [vmem:[#allocation2 + $0xc8] sm:$0xff]
    %v207 = vld [vmem:[#allocation2 + $0xd0] sm:$0xff]
    %v208 = vld [vmem:[#allocation2 + $0xd8] sm:$0xff]
    %v209 = vld [vmem:[#allocation2 + $0xe0] sm:$0xff]
    %v210 = vld [vmem:[#allocation2 + $0xe8] sm:$0xff]
    %v211 = vld [vmem:[#allocation2 + $0xf0] sm:$0xff]
    %v212 = vld [vmem:[#allocation2 + $0xf8] sm:$0xff]
    %v213 = vld [vmem:[#allocation6] sm:$0xf]
    %v215 = vperm.slane %v213, 0
    %v216 = vperm.slane %v213, 1
    %v217 = vperm.slane %v213, 2
    %v218 = vperm.slane %v213, 3
    %v231 = vunpack.c.l.b16 %v109
    %v232 = vunpack.c.l.b16 %v110
    %v233 = vunpack.c.l.b16 %v111
    %v234 = vunpack.c.l.b16 %v112
    %v235 = vunpack.c.l.b16 %v113
    %v236 = vunpack.c.l.b16 %v114
    %v237 = vunpack.c.l.b16 %v115
    %v238 = vunpack.c.l.b16 %v116
    %v239 = vpack.c.b16 %v232, %v231
    %v240 = vpack.c.b16 %v234, %v233
    %v241 = vpack.c.b16 %v236, %v235
    %v242 = vpack.c.b16 %v238, %v237
    %v279 = vunpack.c.l.b16 %v181
    %v280 = vunpack.c.h.b16 %v181
    %v281 = vunpack.c.l.b16 %v182
    %v282 = vunpack.c.h.b16 %v182
    %v283 = vunpack.c.l.b16 %v183
    %v284 = vunpack.c.h.b16 %v183
    %v285 = vunpack.c.l.b16 %v184
    %v286 = vunpack.c.h.b16 %v184
    %v287 = vunpack.c.l.b16 %v185
    %v288 = vunpack.c.h.b16 %v185
    %v289 = vunpack.c.l.b16 %v186
    %v290 = vunpack.c.h.b16 %v186
    %v291 = vunpack.c.l.b16 %v187
    %v292 = vunpack.c.h.b16 %v187
    %v293 = vunpack.c.l.b16 %v188
    %v294 = vunpack.c.h.b16 %v188
    %v295 = vunpack.c.l.b16 %v189
    %v296 = vunpack.c.h.b16 %v189
    %v297 = vunpack.c.l.b16 %v190
    %v298 = vunpack.c.h.b16 %v190
    %v299 = vunpack.c.l.b16 %v191
    %v300 = vunpack.c.h.b16 %v191
    %v301 = vunpack.c.l.b16 %v192
    %v302 = vunpack.c.h.b16 %v192
    %v303 = vunpack.c.l.b16 %v193
    %v304 = vunpack.c.h.b16 %v193
    %v305 = vunpack.c.l.b16 %v194
    %v306 = vunpack.c.h.b16 %v194
    %v307 = vunpack.c.l.b16 %v195
    %v308 = vunpack.c.h.b16 %v195
    %v309 = vunpack.c.l.b16 %v196
    %v310 = vunpack.c.h.b16 %v196
    %v311 = vunpack.c.l.b16 %v197
    %v312 = vunpack.c.h.b16 %v197
    %v313 = vunpack.c.l.b16 %v198
    %v314 = vunpack.c.h.b16 %v198
    %v315 = vunpack.c.l.b16 %v199
    %v316 = vunpack.c.h.b16 %v199
    %v317 = vunpack.c.l.b16 %v200
    %v318 = vunpack.c.h.b16 %v200
    %v319 = vunpack.c.l.b16 %v201
    %v320 = vunpack.c.h.b16 %v201
    %v321 = vunpack.c.l.b16 %v202
    %v322 = vunpack.c.h.b16 %v202
    %v323 = vunpack.c.l.b16 %v203
    %v324 = vunpack.c.h.b16 %v203
    %v325 = vunpack.c.l.b16 %v204
    %v326 = vunpack.c.h.b16 %v204
    %v327 = vunpack.c.l.b16 %v205
    %v328 = vunpack.c.h.b16 %v205
    %v329 = vunpack.c.l.b16 %v206
    %v330 = vunpack.c.h.b16 %v206
    %v331 = vunpack.c.l.b16 %v207
    %v332 = vunpack.c.h.b16 %v207
    %v333 = vunpack.c.l.b16 %v208
    %v334 = vunpack.c.h.b16 %v208
    %v335 = vunpack.c.l.b16 %v209
    %v336 = vunpack.c.h.b16 %v209
    %v337 = vunpack.c.l.b16 %v210
    %v338 = vunpack.c.h.b16 %v210
    %v339 = vunpack.c.l.b16 %v211
    %v340 = vunpack.c.h.b16 %v211
    %v341 = vunpack.c.l.b16 %v212
    %v342 = vunpack.c.h.b16 %v212
    %v343 = vpack.c.b16 %v283, %v279
    %v344 = vpack.c.b16 %v284, %v280
    %v345 = vpack.c.b16 %v285, %v281
    %v346 = vpack.c.b16 %v286, %v282
    %v347 = vpack.c.b16 %v291, %v287
    %v348 = vpack.c.b16 %v292, %v288
    %v349 = vpack.c.b16 %v293, %v289
    %v350 = vpack.c.b16 %v294, %v290
    %v351 = vpack.c.b16 %v299, %v295
    %v352 = vpack.c.b16 %v300, %v296
    %v353 = vpack.c.b16 %v301, %v297
    %v354 = vpack.c.b16 %v302, %v298
    %v355 = vpack.c.b16 %v307, %v303
    %v356 = vpack.c.b16 %v308, %v304
    %v357 = vpack.c.b16 %v309, %v305
    %v358 = vpack.c.b16 %v310, %v306
    %v359 = vpack.c.b16 %v315, %v311
    %v360 = vpack.c.b16 %v316, %v312
    %v361 = vpack.c.b16 %v317, %v313
    %v362 = vpack.c.b16 %v318, %v314
    %v363 = vpack.c.b16 %v323, %v319
    %v364 = vpack.c.b16 %v324, %v320
    %v365 = vpack.c.b16 %v325, %v321
    %v366 = vpack.c.b16 %v326, %v322
    %v367 = vpack.c.b16 %v331, %v327
    %v368 = vpack.c.b16 %v332, %v328
    %v369 = vpack.c.b16 %v333, %v329
    %v370 = vpack.c.b16 %v334, %v330
    %v371 = vpack.c.b16 %v339, %v335
    %v372 = vpack.c.b16 %v340, %v336
    %v373 = vpack.c.b16 %v341, %v337
    %v374 = vpack.c.b16 %v342, %v338
    %407 = vmatpush.bf16.msra.mxu0 %v371
    %408 = vmatpush.bf16.msra.mxu0 %v367
    %409 = vmatpush.bf16.msra.mxu0 %v363
    %410 = vmatpush.bf16.msra.mxu0 %v359
    %411 = vmatpush.bf16.msra.mxu0 %v355
    %412 = vmatpush.bf16.msra.mxu0 %v351
    %413 = vmatpush.bf16.msra.mxu0 %v347
    %414 = vmatpush.bf16.msra.mxu0 %v343
    %415 = vmatmul.bf16.gmra.mxu0 %v239
    %v416 = vpop.f32.mrf.mxu0
    %v417 = vadd.f32 %v215, %v416
    %v418 = vpop.f32.mrf.mxu0
    %v419 = vadd.f32 %v215, %v418
    %420 = vmatmul.bf16.gmra.mxu0 %v240
    %v421 = vpop.f32.mrf.mxu0
    %v422 = vadd.f32 %v215, %v421
    %v423 = vpop.f32.mrf.mxu0
    %v424 = vadd.f32 %v215, %v423
    %425 = vmatmul.bf16.gmra.mxu0 %v241
    %v426 = vpop.f32.mrf.mxu0
    %v427 = vadd.f32 %v215, %v426
    %v428 = vpop.f32.mrf.mxu0
    %v429 = vadd.f32 %v215, %v428
    %430 = vmatmul.bf16.gmra.mxu0 %v242
    %v431 = vpop.f32.mrf.mxu0
    %v432 = vadd.f32 %v215, %v431
    %v433 = vpop.f32.mrf.mxu0
    %v434 = vadd.f32 %v215, %v433
    %435 = vdwg.mxu0
    %436 = vmatpush.bf16.msra.mxu0 %v372
    %437 = vmatpush.bf16.msra.mxu0 %v368
    %438 = vmatpush.bf16.msra.mxu0 %v364
    %439 = vmatpush.bf16.msra.mxu0 %v360
    %440 = vmatpush.bf16.msra.mxu0 %v356
    %441 = vmatpush.bf16.msra.mxu0 %v352
    %442 = vmatpush.bf16.msra.mxu0 %v348
    %443 = vmatpush.bf16.msra.mxu0 %v344
    %444 = vmatmul.bf16.gmra.mxu0 %v239
    %v445 = vpop.f32.mrf.mxu0
    %v446 = vadd.f32 %v216, %v445
    %v447 = vpop.f32.mrf.mxu0
    %v448 = vadd.f32 %v216, %v447
    %449 = vmatmul.bf16.gmra.mxu0 %v240
    %v450 = vpop.f32.mrf.mxu0
    %v451 = vadd.f32 %v216, %v450
    %v452 = vpop.f32.mrf.mxu0
    %v453 = vadd.f32 %v216, %v452
    %454 = vmatmul.bf16.gmra.mxu0 %v241
    %v455 = vpop.f32.mrf.mxu0
    %v456 = vadd.f32 %v216, %v455
    %v457 = vpop.f32.mrf.mxu0
    %v458 = vadd.f32 %v216, %v457
    %459 = vmatmul.bf16.gmra.mxu0 %v242
    %v460 = vpop.f32.mrf.mxu0
    %v461 = vadd.f32 %v216, %v460
    %v462 = vpop.f32.mrf.mxu0
    %v463 = vadd.f32 %v216, %v462
    %464 = vdwg.mxu0
    %465 = vmatpush.bf16.msra.mxu0 %v373
    %466 = vmatpush.bf16.msra.mxu0 %v369
    %467 = vmatpush.bf16.msra.mxu0 %v365
    %468 = vmatpush.bf16.msra.mxu0 %v361
    %469 = vmatpush.bf16.msra.mxu0 %v357
    %470 = vmatpush.bf16.msra.mxu0 %v353
    %471 = vmatpush.bf16.msra.mxu0 %v349
    %472 = vmatpush.bf16.msra.mxu0 %v345
    %473 = vmatmul.bf16.gmra.mxu0 %v239
    %v474 = vpop.f32.mrf.mxu0
    %v475 = vadd.f32 %v217, %v474
    %v476 = vpop.f32.mrf.mxu0
    %v477 = vadd.f32 %v217, %v476
    %478 = vmatmul.bf16.gmra.mxu0 %v240
    %v479 = vpop.f32.mrf.mxu0
    %v480 = vadd.f32 %v217, %v479
    %v481 = vpop.f32.mrf.mxu0
    %v482 = vadd.f32 %v217, %v481
    %483 = vmatmul.bf16.gmra.mxu0 %v241
    %v484 = vpop.f32.mrf.mxu0
    %v485 = vadd.f32 %v217, %v484
    %v486 = vpop.f32.mrf.mxu0
    %v487 = vadd.f32 %v217, %v486
    %488 = vmatmul.bf16.gmra.mxu0 %v242
    %v489 = vpop.f32.mrf.mxu0
    %v490 = vadd.f32 %v217, %v489
    %v491 = vpop.f32.mrf.mxu0
    %v492 = vadd.f32 %v217, %v491
    %493 = vdwg.mxu0
    %494 = vmatpush.bf16.msra.mxu0 %v374
    %495 = vmatpush.bf16.msra.mxu0 %v370
    %496 = vmatpush.bf16.msra.mxu0 %v366
    %497 = vmatpush.bf16.msra.mxu0 %v362
    %498 = vmatpush.bf16.msra.mxu0 %v358
    %499 = vmatpush.bf16.msra.mxu0 %v354
    %500 = vmatpush.bf16.msra.mxu0 %v350
    %501 = vmatpush.bf16.msra.mxu0 %v346
    %502 = vmatmul.bf16.gmra.mxu0 %v239
    %v503 = vpop.f32.mrf.mxu0
    %v504 = vadd.f32 %v218, %v503
    %v505 = vpop.f32.mrf.mxu0
    %v506 = vadd.f32 %v218, %v505
    %507 = vmatmul.bf16.gmra.mxu0 %v240
    %v508 = vpop.f32.mrf.mxu0
    %v509 = vadd.f32 %v218, %v508
    %v510 = vpop.f32.mrf.mxu0
    %v511 = vadd.f32 %v218, %v510
    %512 = vmatmul.bf16.gmra.mxu0 %v241
    %v513 = vpop.f32.mrf.mxu0
    %v514 = vadd.f32 %v218, %v513
    %v515 = vpop.f32.mrf.mxu0
    %v516 = vadd.f32 %v218, %v515
    %517 = vmatmul.bf16.gmra.mxu0 %v242
    %v518 = vpop.f32.mrf.mxu0
    %v519 = vadd.f32 %v218, %v518
    %v520 = vpop.f32.mrf.mxu0
    %v521 = vadd.f32 %v218, %v520
    %522 = vdwg.mxu0
    %v523 = vld [vmem:[#allocation7] sm:$0xff]
    %v524 = vld [vmem:[#allocation7 + $0x8] sm:$0xff]
    %v525 = vld [vmem:[#allocation7 + $0x10] sm:$0xff]
    %v526 = vld [vmem:[#allocation7 + $0x18] sm:$0xff]
    %v527 = vld [vmem:[#allocation7 + $0x20] sm:$0xff]
    %v528 = vld [vmem:[#allocation7 + $0x28] sm:$0xff]
    %v529 = vld [vmem:[#allocation7 + $0x30] sm:$0xff]
    %v530 = vld [vmem:[#allocation7 + $0x38] sm:$0xff]
    %v531 = vld [vmem:[#allocation7 + $0x40] sm:$0xff]
    %v532 = vld [vmem:[#allocation7 + $0x48] sm:$0xff]
    %v533 = vld [vmem:[#allocation7 + $0x50] sm:$0xff]
    %v534 = vld [vmem:[#allocation7 + $0x58] sm:$0xff]
    %v535 = vld [vmem:[#allocation7 + $0x60] sm:$0xff]
    %v536 = vld [vmem:[#allocation7 + $0x68] sm:$0xff]
    %v537 = vld [vmem:[#allocation7 + $0x70] sm:$0xff]
    %v538 = vld [vmem:[#allocation7 + $0x78] sm:$0xff]
    %v539 = vld [vmem:[#allocation7 + $0x80] sm:$0xff]
    %v540 = vld [vmem:[#allocation7 + $0x88] sm:$0xff]
    %v541 = vld [vmem:[#allocation7 + $0x90] sm:$0xff]
    %v542 = vld [vmem:[#allocation7 + $0x98] sm:$0xff]
    %v543 = vld [vmem:[#allocation7 + $0xa0] sm:$0xff]
    %v544 = vld [vmem:[#allocation7 + $0xa8] sm:$0xff]
    %v545 = vld [vmem:[#allocation7 + $0xb0] sm:$0xff]
    %v546 = vld [vmem:[#allocation7 + $0xb8] sm:$0xff]
    %v547 = vld [vmem:[#allocation7 + $0xc0] sm:$0xff]
    %v548 = vld [vmem:[#allocation7 + $0xc8] sm:$0xff]
    %v549 = vld [vmem:[#allocation7 + $0xd0] sm:$0xff]
    %v550 = vld [vmem:[#allocation7 + $0xd8] sm:$0xff]
    %v551 = vld [vmem:[#allocation7 + $0xe0] sm:$0xff]
    %v552 = vld [vmem:[#allocation7 + $0xe8] sm:$0xff]
    %v553 = vld [vmem:[#allocation7 + $0xf0] sm:$0xff]
    %v554 = vld [vmem:[#allocation7 + $0xf8] sm:$0xff]
    %v555 = vld [vmem:[%s6] sm:$0xf]
    %v557 = vperm.slane %v555, 0
    %v558 = vperm.slane %v555, 1
    %v559 = vperm.slane %v555, 2
    %v560 = vperm.slane %v555, 3
    %v597 = vunpack.c.l.b16 %v523
    %v598 = vunpack.c.h.b16 %v523
    %v599 = vunpack.c.l.b16 %v524
    %v600 = vunpack.c.h.b16 %v524
    %v601 = vunpack.c.l.b16 %v525
    %v602 = vunpack.c.h.b16 %v525
    %v603 = vunpack.c.l.b16 %v526
    %v604 = vunpack.c.h.b16 %v526
    %v605 = vunpack.c.l.b16 %v527
    %v606 = vunpack.c.h.b16 %v527
    %v607 = vunpack.c.l.b16 %v528
    %v608 = vunpack.c.h.b16 %v528
    %v609 = vunpack.c.l.b16 %v529
    %v610 = vunpack.c.h.b16 %v529
    %v611 = vunpack.c.l.b16 %v530
    %v612 = vunpack.c.h.b16 %v530
    %v613 = vunpack.c.l.b16 %v531
    %v614 = vunpack.c.h.b16 %v531
    %v615 = vunpack.c.l.b16 %v532
    %v616 = vunpack.c.h.b16 %v532
    %v617 = vunpack.c.l.b16 %v533
    %v618 = vunpack.c.h.b16 %v533
    %v619 = vunpack.c.l.b16 %v534
    %v620 = vunpack.c.h.b16 %v534
    %v621 = vunpack.c.l.b16 %v535
    %v622 = vunpack.c.h.b16 %v535
    %v623 = vunpack.c.l.b16 %v536
    %v624 = vunpack.c.h.b16 %v536
    %v625 = vunpack.c.l.b16 %v537
    %v626 = vunpack.c.h.b16 %v537
    %v627 = vunpack.c.l.b16 %v538
    %v628 = vunpack.c.h.b16 %v538
    %v629 = vunpack.c.l.b16 %v539
    %v630 = vunpack.c.h.b16 %v539
    %v631 = vunpack.c.l.b16 %v540
    %v632 = vunpack.c.h.b16 %v540
    %v633 = vunpack.c.l.b16 %v541
    %v634 = vunpack.c.h.b16 %v541
    %v635 = vunpack.c.l.b16 %v542
    %v636 = vunpack.c.h.b16 %v542
    %v637 = vunpack.c.l.b16 %v543
    %v638 = vunpack.c.h.b16 %v543
    %v639 = vunpack.c.l.b16 %v544
    %v640 = vunpack.c.h.b16 %v544
    %v641 = vunpack.c.l.b16 %v545
    %v642 = vunpack.c.h.b16 %v545
    %v643 = vunpack.c.l.b16 %v546
    %v644 = vunpack.c.h.b16 %v546
    %v645 = vunpack.c.l.b16 %v547
    %v646 = vunpack.c.h.b16 %v547
    %v647 = vunpack.c.l.b16 %v548
    %v648 = vunpack.c.h.b16 %v548
    %v649 = vunpack.c.l.b16 %v549
    %v650 = vunpack.c.h.b16 %v549
    %v651 = vunpack.c.l.b16 %v550
    %v652 = vunpack.c.h.b16 %v550
    %v653 = vunpack.c.l.b16 %v551
    %v654 = vunpack.c.h.b16 %v551
    %v655 = vunpack.c.l.b16 %v552
    %v656 = vunpack.c.h.b16 %v552
    %v657 = vunpack.c.l.b16 %v553
    %v658 = vunpack.c.h.b16 %v553
    %v659 = vunpack.c.l.b16 %v554
    %v660 = vunpack.c.h.b16 %v554
    %v661 = vpack.c.b16 %v601, %v597
    %v662 = vpack.c.b16 %v602, %v598
    %v663 = vpack.c.b16 %v603, %v599
    %v664 = vpack.c.b16 %v604, %v600
    %v665 = vpack.c.b16 %v609, %v605
    %v666 = vpack.c.b16 %v610, %v606
    %v667 = vpack.c.b16 %v611, %v607
    %v668 = vpack.c.b16 %v612, %v608
    %v669 = vpack.c.b16 %v617, %v613
    %v670 = vpack.c.b16 %v618, %v614
    %v671 = vpack.c.b16 %v619, %v615
    %v672 = vpack.c.b16 %v620, %v616
    %v673 = vpack.c.b16 %v625, %v621
    %v674 = vpack.c.b16 %v626, %v622
    %v675 = vpack.c.b16 %v627, %v623
    %v676 = vpack.c.b16 %v628, %v624
    %v677 = vpack.c.b16 %v633, %v629
    %v678 = vpack.c.b16 %v634, %v630
    %v679 = vpack.c.b16 %v635, %v631
    %v680 = vpack.c.b16 %v636, %v632
    %v681 = vpack.c.b16 %v641, %v637
    %v682 = vpack.c.b16 %v642, %v638
    %v683 = vpack.c.b16 %v643, %v639
    %v684 = vpack.c.b16 %v644, %v640
    %v685 = vpack.c.b16 %v649, %v645
    %v686 = vpack.c.b16 %v650, %v646
    %v687 = vpack.c.b16 %v651, %v647
    %v688 = vpack.c.b16 %v652, %v648
    %v689 = vpack.c.b16 %v657, %v653
    %v690 = vpack.c.b16 %v658, %v654
    %v691 = vpack.c.b16 %v659, %v655
    %v692 = vpack.c.b16 %v660, %v656
    %725 = vmatpush.bf16.msra.mxu0 %v689
    %726 = vmatpush.bf16.msra.mxu0 %v685
    %727 = vmatpush.bf16.msra.mxu0 %v681
    %728 = vmatpush.bf16.msra.mxu0 %v677
    %729 = vmatpush.bf16.msra.mxu0 %v673
    %730 = vmatpush.bf16.msra.mxu0 %v669
    %731 = vmatpush.bf16.msra.mxu0 %v665
    %732 = vmatpush.bf16.msra.mxu0 %v661
    %733 = vmatmul.bf16.gmra.mxu0 %v116
    %v734 = vpop.f32.mrf.mxu0
    %v735 = vadd.f32 %v557, %v734
    %v736 = vpop.f32.mrf.mxu0
    %737 = vdwg.mxu0
    %738 = vmatpush.bf16.msra.mxu0 %v690
    %739 = vmatpush.bf16.msra.mxu0 %v686
    %740 = vmatpush.bf16.msra.mxu0 %v682
    %741 = vmatpush.bf16.msra.mxu0 %v678
    %742 = vmatpush.bf16.msra.mxu0 %v674
    %743 = vmatpush.bf16.msra.mxu0 %v670
    %744 = vmatpush.bf16.msra.mxu0 %v666
    %745 = vmatpush.bf16.msra.mxu0 %v662
    %746 = vmatmul.bf16.gmra.mxu0 %v116
    %v747 = vpop.f32.mrf.mxu0
    %v748 = vadd.f32 %v558, %v747
    %v749 = vpop.f32.mrf.mxu0
    %750 = vdwg.mxu0
    %751 = vmatpush.bf16.msra.mxu0 %v691
    %752 = vmatpush.bf16.msra.mxu0 %v687
    %753 = vmatpush.bf16.msra.mxu0 %v683
    %754 = vmatpush.bf16.msra.mxu0 %v679
    %755 = vmatpush.bf16.msra.mxu0 %v675
    %756 = vmatpush.bf16.msra.mxu0 %v671
    %757 = vmatpush.bf16.msra.mxu0 %v667
    %758 = vmatpush.bf16.msra.mxu0 %v663
    %759 = vmatmul.bf16.gmra.mxu0 %v116
    %v760 = vpop.f32.mrf.mxu0
    %v761 = vadd.f32 %v559, %v760
    %v762 = vpop.f32.mrf.mxu0
    %763 = vdwg.mxu0
    %764 = vmatpush.bf16.msra.mxu0 %v692
    %765 = vmatpush.bf16.msra.mxu0 %v688
    %766 = vmatpush.bf16.msra.mxu0 %v684
    %767 = vmatpush.bf16.msra.mxu0 %v680
    %768 = vmatpush.bf16.msra.mxu0 %v676
    %769 = vmatpush.bf16.msra.mxu0 %v672
    %770 = vmatpush.bf16.msra.mxu0 %v668
    %771 = vmatpush.bf16.msra.mxu0 %v664
    %772 = vmatmul.bf16.gmra.mxu0 %v116
    %v773 = vpop.f32.mrf.mxu0
    %v774 = vadd.f32 %v560, %v773
    %v775 = vpop.f32.mrf.mxu0
    %776 = vdwg.mxu0
    %v809 = vunpack.c.l.b16 %v117
    %v810 = vunpack.c.h.b16 %v117
    %v811 = vunpack.c.l.b16 %v118
    %v812 = vunpack.c.h.b16 %v118
    %v813 = vunpack.c.l.b16 %v119
    %v814 = vunpack.c.h.b16 %v119
    %v815 = vunpack.c.l.b16 %v120
    %v816 = vunpack.c.h.b16 %v120
    %v817 = vunpack.c.l.b16 %v121
    %v818 = vunpack.c.h.b16 %v121
    %v819 = vunpack.c.l.b16 %v122
    %v820 = vunpack.c.h.b16 %v122
    %v821 = vunpack.c.l.b16 %v123
    %v822 = vunpack.c.h.b16 %v123
    %v823 = vunpack.c.l.b16 %v124
    %v824 = vunpack.c.h.b16 %v124
    %v825 = vunpack.c.l.b16 %v125
    %v826 = vunpack.c.h.b16 %v125
    %v827 = vunpack.c.l.b16 %v126
    %v828 = vunpack.c.h.b16 %v126
    %v829 = vunpack.c.l.b16 %v127
    %v830 = vunpack.c.h.b16 %v127
    %v831 = vunpack.c.l.b16 %v128
    %v832 = vunpack.c.h.b16 %v128
    %v833 = vunpack.c.l.b16 %v129
    %v834 = vunpack.c.h.b16 %v129
    %v835 = vunpack.c.l.b16 %v130
    %v836 = vunpack.c.h.b16 %v130
    %v837 = vunpack.c.l.b16 %v131
    %v838 = vunpack.c.h.b16 %v131
    %v839 = vunpack.c.l.b16 %v132
    %v840 = vunpack.c.h.b16 %v132
    %v841 = vunpack.c.l.b16 %v133
    %v842 = vunpack.c.h.b16 %v133
    %v843 = vunpack.c.l.b16 %v134
    %v844 = vunpack.c.h.b16 %v134
    %v845 = vunpack.c.l.b16 %v135
    %v846 = vunpack.c.h.b16 %v135
    %v847 = vunpack.c.l.b16 %v136
    %v848 = vunpack.c.h.b16 %v136
    %v849 = vunpack.c.l.b16 %v137
    %v850 = vunpack.c.h.b16 %v137
    %v851 = vunpack.c.l.b16 %v138
    %v852 = vunpack.c.h.b16 %v138
    %v853 = vunpack.c.l.b16 %v139
    %v854 = vunpack.c.h.b16 %v139
    %v855 = vunpack.c.l.b16 %v140
    %v856 = vunpack.c.h.b16 %v140
    %v857 = vunpack.c.l.b16 %v141
    %v858 = vunpack.c.h.b16 %v141
    %v859 = vunpack.c.l.b16 %v142
    %v860 = vunpack.c.h.b16 %v142
    %v861 = vunpack.c.l.b16 %v143
    %v862 = vunpack.c.h.b16 %v143
    %v863 = vunpack.c.l.b16 %v144
    %v864 = vunpack.c.h.b16 %v144
    %v865 = vunpack.c.l.b16 %v145
    %v866 = vunpack.c.h.b16 %v145
    %v867 = vunpack.c.l.b16 %v146
    %v868 = vunpack.c.h.b16 %v146
    %v869 = vunpack.c.l.b16 %v147
    %v870 = vunpack.c.h.b16 %v147
    %v871 = vunpack.c.l.b16 %v148
    %v872 = vunpack.c.h.b16 %v148
    %v873 = vpack.c.b16 %v813, %v809
    %v874 = vpack.c.b16 %v814, %v810
    %v875 = vpack.c.b16 %v815, %v811
    %v876 = vpack.c.b16 %v816, %v812
    %v877 = vpack.c.b16 %v821, %v817
    %v878 = vpack.c.b16 %v822, %v818
    %v879 = vpack.c.b16 %v823, %v819
    %v880 = vpack.c.b16 %v824, %v820
    %v881 = vpack.c.b16 %v829, %v825
    %v882 = vpack.c.b16 %v830, %v826
    %v883 = vpack.c.b16 %v831, %v827
    %v884 = vpack.c.b16 %v832, %v828
    %v885 = vpack.c.b16 %v837, %v833
    %v886 = vpack.c.b16 %v838, %v834
    %v887 = vpack.c.b16 %v839, %v835
    %v888 = vpack.c.b16 %v840, %v836
    %v889 = vpack.c.b16 %v845, %v841
    %v890 = vpack.c.b16 %v846, %v842
    %v891 = vpack.c.b16 %v847, %v843
    %v892 = vpack.c.b16 %v848, %v844
    %v893 = vpack.c.b16 %v853, %v849
    %v894 = vpack.c.b16 %v854, %v850
    %v895 = vpack.c.b16 %v855, %v851
    %v896 = vpack.c.b16 %v856, %v852
    %v897 = vpack.c.b16 %v861, %v857
    %v898 = vpack.c.b16 %v862, %v858
    %v899 = vpack.c.b16 %v863, %v859
    %v900 = vpack.c.b16 %v864, %v860
    %v901 = vpack.c.b16 %v869, %v865
    %v902 = vpack.c.b16 %v870, %v866
    %v903 = vpack.c.b16 %v871, %v867
    %v904 = vpack.c.b16 %v872, %v868
    %937 = vmatpush.bf16.msra.mxu0 %v901
    %938 = vmatpush.bf16.msra.mxu0 %v897
    %939 = vmatpush.bf16.msra.mxu0 %v893
    %940 = vmatpush.bf16.msra.mxu0 %v889
    %941 = vmatpush.bf16.msra.mxu0 %v885
    %942 = vmatpush.bf16.msra.mxu0 %v881
    %943 = vmatpush.bf16.msra.mxu0 %v877
    %944 = vmatpush.bf16.msra.mxu0 %v873
    %945 = vmatmul.bf16.gmra.mxu0 0
    %v946 = vpop.f32.mrf.mxu0
    %v947 = vadd.f32 0.0, %v946
    %v948 = vpop.f32.mrf.mxu0
    %949 = vdwg.mxu0
    %950 = vmatpush.bf16.msra.mxu0 %v902
    %951 = vmatpush.bf16.msra.mxu0 %v898
    %952 = vmatpush.bf16.msra.mxu0 %v894
    %953 = vmatpush.bf16.msra.mxu0 %v890
    %954 = vmatpush.bf16.msra.mxu0 %v886
    %955 = vmatpush.bf16.msra.mxu0 %v882
    %956 = vmatpush.bf16.msra.mxu0 %v878
    %957 = vmatpush.bf16.msra.mxu0 %v874
    %958 = vmatmul.bf16.gmra.mxu0 0
    %v959 = vpop.f32.mrf.mxu0
    %v960 = vadd.f32 0.0, %v959
    %v961 = vpop.f32.mrf.mxu0
    %962 = vdwg.mxu0
    %963 = vmatpush.bf16.msra.mxu0 %v903
    %964 = vmatpush.bf16.msra.mxu0 %v899
    %965 = vmatpush.bf16.msra.mxu0 %v895
    %966 = vmatpush.bf16.msra.mxu0 %v891
    %967 = vmatpush.bf16.msra.mxu0 %v887
    %968 = vmatpush.bf16.msra.mxu0 %v883
    %969 = vmatpush.bf16.msra.mxu0 %v879
    %970 = vmatpush.bf16.msra.mxu0 %v875
    %971 = vmatmul.bf16.gmra.mxu0 0
    %v972 = vpop.f32.mrf.mxu0
    %v973 = vadd.f32 0.0, %v972
    %v974 = vpop.f32.mrf.mxu0
    %975 = vdwg.mxu0
    %976 = vmatpush.bf16.msra.mxu0 %v904
    %977 = vmatpush.bf16.msra.mxu0 %v900
    %978 = vmatpush.bf16.msra.mxu0 %v896
    %979 = vmatpush.bf16.msra.mxu0 %v892
    %980 = vmatpush.bf16.msra.mxu0 %v888
    %981 = vmatpush.bf16.msra.mxu0 %v884
    %982 = vmatpush.bf16.msra.mxu0 %v880
    %983 = vmatpush.bf16.msra.mxu0 %v876
    %984 = vmatmul.bf16.gmra.mxu0 0
    %v985 = vpop.f32.mrf.mxu0
    %v986 = vadd.f32 0.0, %v985
    %v987 = vpop.f32.mrf.mxu0
    %988 = vdwg.mxu0
    %v989 = vadd.f32 %v417, %v947
    %v990 = vadd.f32 %v446, %v960
    %v991 = vadd.f32 %v475, %v973
    %v992 = vadd.f32 %v504, %v986
    %v993 = vxor.u32 %v989, 2147483648
    %v994 = vmul.f32 %v993, 1.442695
    %v995 = vpow.pop %v994
    %v996 = vadd.f32 %v995, 1.0
    %v997 = vrcp.pop %v996
    %v998 = vmul.f32 %v996, %v997
    %v999 = vsub.f32 1.0, %v998
    %v1000 = vmul.f32 %v997, %v999
    %v1001 = vadd.f32 %v997, %v1000
    %vm1002 = vweird.f32 %v996
    %vm1003 = vweird.f32 %v997
    %vm1004 = vmor %vm1002, %vm1003
    %v1005 = vsel %vm1004, %v997, %v1001
    %v1006 = vand.u32 2147483647, %v996
    %vm1007 = vcmp.eq.f32.partialorder %v1006, 8.507059e+37
    %v1008 = vand.u32 %v996, 2147483648
    %v1009 = vor.u32 1.1754944e-38, %v1008
    %v1010 = vsel %vm1007, %v1009, %v1005
    %v1011 = vmul.f32 1.0, %v1010
    %v1012 = vxor.u32 %v990, 2147483648
    %v1013 = vmul.f32 %v1012, 1.442695
    %v1014 = vpow.pop %v1013
    %v1015 = vadd.f32 %v1014, 1.0
    %v1016 = vrcp.pop %v1015
    %v1017 = vmul.f32 %v1015, %v1016
    %v1018 = vsub.f32 1.0, %v1017
    %v1019 = vmul.f32 %v1016, %v1018
    %v1020 = vadd.f32 %v1016, %v1019
    %vm1021 = vweird.f32 %v1015
    %vm1022 = vweird.f32 %v1016
    %vm1023 = vmor %vm1021, %vm1022
    %v1024 = vsel %vm1023, %v1016, %v1020
    %v1025 = vand.u32 2147483647, %v1015
    %vm1026 = vcmp.eq.f32.partialorder %v1025, 8.507059e+37
    %v1027 = vand.u32 %v1015, 2147483648
    %v1028 = vor.u32 1.1754944e-38, %v1027
    %v1029 = vsel %vm1026, %v1028, %v1024
    %v1030 = vmul.f32 1.0, %v1029
    %v1031 = vtanh.pop %v991
    %v1032 = vxor.u32 %v992, 2147483648
    %v1033 = vmul.f32 %v1032, 1.442695
    %v1034 = vpow.pop %v1033
    %v1035 = vadd.f32 %v1034, 1.0
    %v1036 = vrcp.pop %v1035
    %v1037 = vmul.f32 %v1035, %v1036
    %v1038 = vsub.f32 1.0, %v1037
    %v1039 = vmul.f32 %v1036, %v1038
    %v1040 = vadd.f32 %v1036, %v1039
    %vm1041 = vweird.f32 %v1035
    %vm1042 = vweird.f32 %v1036
    %vm1043 = vmor %vm1041, %vm1042
    %v1044 = vsel %vm1043, %v1036, %v1040
    %v1045 = vand.u32 2147483647, %v1035
    %vm1046 = vcmp.eq.f32.partialorder %v1045, 8.507059e+37
    %v1047 = vand.u32 %v1035, 2147483648
    %v1048 = vor.u32 1.1754944e-38, %v1047
    %v1049 = vsel %vm1046, %v1048, %v1044
    %v1050 = vmul.f32 1.0, %v1049
    %v1051 = vmul.f32 %v1030, 0.0
    %v1052 = vmul.f32 %v1011, %v1031
    %v1053 = vadd.f32 %v1051, %v1052
    %v1054 = vtanh.pop %v1053
    %v1055 = vmul.f32 %v1050, %v1054
    %v1056 = vpack.c.bf16 %v1055, %v1055
    %1057 = vmatpush.bf16.msra.mxu0 %v901
    %1058 = vmatpush.bf16.msra.mxu0 %v897
    %1059 = vmatpush.bf16.msra.mxu0 %v893
    %1060 = vmatpush.bf16.msra.mxu0 %v889
    %1061 = vmatpush.bf16.msra.mxu0 %v885
    %1062 = vmatpush.bf16.msra.mxu0 %v881
    %1063 = vmatpush.bf16.msra.mxu0 %v877
    %1064 = vmatpush.bf16.msra.mxu0 %v873
    %1065 = vmatmul.bf16.gmra.mxu0 %v1056
    %v1066 = vpop.f32.mrf.mxu0
    %v1067 = vadd.f32 0.0, %v1066
    %v1068 = vpop.f32.mrf.mxu0
    %1069 = vdwg.mxu0
    %1070 = vmatpush.bf16.msra.mxu0 %v902
    %1071 = vmatpush.bf16.msra.mxu0 %v898
    %1072 = vmatpush.bf16.msra.mxu0 %v894
    %1073 = vmatpush.bf16.msra.mxu0 %v890
    %1074 = vmatpush.bf16.msra.mxu0 %v886
    %1075 = vmatpush.bf16.msra.mxu0 %v882
    %1076 = vmatpush.bf16.msra.mxu0 %v878
    %1077 = vmatpush.bf16.msra.mxu0 %v874
    %1078 = vmatmul.bf16.gmra.mxu0 %v1056
    %v1079 = vpop.f32.mrf.mxu0
    %v1080 = vadd.f32 0.0, %v1079
    %v1081 = vpop.f32.mrf.mxu0
    %1082 = vdwg.mxu0
    %1083 = vmatpush.bf16.msra.mxu0 %v903
    %1084 = vmatpush.bf16.msra.mxu0 %v899
    %1085 = vmatpush.bf16.msra.mxu0 %v895
    %1086 = vmatpush.bf16.msra.mxu0 %v891
    %1087 = vmatpush.bf16.msra.mxu0 %v887
    %1088 = vmatpush.bf16.msra.mxu0 %v883
    %1089 = vmatpush.bf16.msra.mxu0 %v879
    %1090 = vmatpush.bf16.msra.mxu0 %v875
    %1091 = vmatmul.bf16.gmra.mxu0 %v1056
    %v1092 = vpop.f32.mrf.mxu0
    %v1093 = vadd.f32 0.0, %v1092
    %v1094 = vpop.f32.mrf.mxu0
    %1095 = vdwg.mxu0
    %1096 = vmatpush.bf16.msra.mxu0 %v904
    %1097 = vmatpush.bf16.msra.mxu0 %v900
    %1098 = vmatpush.bf16.msra.mxu0 %v896
    %1099 = vmatpush.bf16.msra.mxu0 %v892
    %1100 = vmatpush.bf16.msra.mxu0 %v888
    %1101 = vmatpush.bf16.msra.mxu0 %v884
    %1102 = vmatpush.bf16.msra.mxu0 %v880
    %1103 = vmatpush.bf16.msra.mxu0 %v876
    %1104 = vmatmul.bf16.gmra.mxu0 %v1056
    %v1105 = vpop.f32.mrf.mxu0
    %v1106 = vadd.f32 0.0, %v1105
    %v1107 = vpop.f32.mrf.mxu0
    %1108 = vdwg.mxu0
    %v1109 = vadd.f32 %v419, %v1067
    %v1110 = vadd.f32 %v448, %v1080
    %v1111 = vadd.f32 %v477, %v1093
    %v1112 = vadd.f32 %v506, %v1106
    %v1113 = vxor.u32 %v1109, 2147483648
    %v1114 = vmul.f32 %v1113, 1.442695
    %v1115 = vpow.pop %v1114
    %v1116 = vadd.f32 %v1115, 1.0
    %v1117 = vrcp.pop %v1116
    %v1118 = vmul.f32 %v1116, %v1117
    %v1119 = vsub.f32 1.0, %v1118
    %v1120 = vmul.f32 %v1117, %v1119
    %v1121 = vadd.f32 %v1117, %v1120
    %vm1122 = vweird.f32 %v1116
    %vm1123 = vweird.f32 %v1117
    %vm1124 = vmor %vm1122, %vm1123
    %v1125 = vsel %vm1124, %v1117, %v1121
    %v1126 = vand.u32 2147483647, %v1116
    %vm1127 = vcmp.eq.f32.partialorder %v1126, 8.507059e+37
    %v1128 = vand.u32 %v1116, 2147483648
    %v1129 = vor.u32 1.1754944e-38, %v1128
    %v1130 = vsel %vm1127, %v1129, %v1125
    %v1131 = vmul.f32 1.0, %v1130
    %v1132 = vxor.u32 %v1110, 2147483648
    %v1133 = vmul.f32 %v1132, 1.442695
    %v1134 = vpow.pop %v1133
    %v1135 = vadd.f32 %v1134, 1.0
    %v1136 = vrcp.pop %v1135
    %v1137 = vmul.f32 %v1135, %v1136
    %v1138 = vsub.f32 1.0, %v1137
    %v1139 = vmul.f32 %v1136, %v1138
    %v1140 = vadd.f32 %v1136, %v1139
    %vm1141 = vweird.f32 %v1135
    %vm1142 = vweird.f32 %v1136
    %vm1143 = vmor %vm1141, %vm1142
    %v1144 = vsel %vm1143, %v1136, %v1140
    %v1145 = vand.u32 2147483647, %v1135
    %vm1146 = vcmp.eq.f32.partialorder %v1145, 8.507059e+37
    %v1147 = vand.u32 %v1135, 2147483648
    %v1148 = vor.u32 1.1754944e-38, %v1147
    %v1149 = vsel %vm1146, %v1148, %v1144
    %v1150 = vmul.f32 1.0, %v1149
    %v1151 = vtanh.pop %v1111
    %v1152 = vxor.u32 %v1112, 2147483648
    %v1153 = vmul.f32 %v1152, 1.442695
    %v1154 = vpow.pop %v1153
    %v1155 = vadd.f32 %v1154, 1.0
    %v1156 = vrcp.pop %v1155
    %v1157 = vmul.f32 %v1155, %v1156
    %v1158 = vsub.f32 1.0, %v1157
    %v1159 = vmul.f32 %v1156, %v1158
    %v1160 = vadd.f32 %v1156, %v1159
    %vm1161 = vweird.f32 %v1155
    %vm1162 = vweird.f32 %v1156
    %vm1163 = vmor %vm1161, %vm1162
    %v1164 = vsel %vm1163, %v1156, %v1160
    %v1165 = vand.u32 2147483647, %v1155
    %vm1166 = vcmp.eq.f32.partialorder %v1165, 8.507059e+37
    %v1167 = vand.u32 %v1155, 2147483648
    %v1168 = vor.u32 1.1754944e-38, %v1167
    %v1169 = vsel %vm1166, %v1168, %v1164
    %v1170 = vmul.f32 1.0, %v1169
    %v1171 = vmul.f32 %v1150, %v1053
    %v1172 = vmul.f32 %v1131, %v1151
    %v1173 = vadd.f32 %v1171, %v1172
    %v1174 = vtanh.pop %v1173
    %v1175 = vmul.f32 %v1170, %v1174
    %v1176 = vpack.c.bf16 %v1175, %v1175
    %1177 = vmatpush.bf16.msra.mxu0 %v901
    %1178 = vmatpush.bf16.msra.mxu0 %v897
    %1179 = vmatpush.bf16.msra.mxu0 %v893
    %1180 = vmatpush.bf16.msra.mxu0 %v889
    %1181 = vmatpush.bf16.msra.mxu0 %v885
    %1182 = vmatpush.bf16.msra.mxu0 %v881
    %1183 = vmatpush.bf16.msra.mxu0 %v877
    %1184 = vmatpush.bf16.msra.mxu0 %v873
    %1185 = vmatmul.bf16.gmra.mxu0 %v1176
    %v1186 = vpop.f32.mrf.mxu0
    %v1187 = vadd.f32 0.0, %v1186
    %v1188 = vpop.f32.mrf.mxu0
    %1189 = vdwg.mxu0
    %1190 = vmatpush.bf16.msra.mxu0 %v902
    %1191 = vmatpush.bf16.msra.mxu0 %v898
    %1192 = vmatpush.bf16.msra.mxu0 %v894
    %1193 = vmatpush.bf16.msra.mxu0 %v890
    %1194 = vmatpush.bf16.msra.mxu0 %v886
    %1195 = vmatpush.bf16.msra.mxu0 %v882
    %1196 = vmatpush.bf16.msra.mxu0 %v878
    %1197 = vmatpush.bf16.msra.mxu0 %v874
    %1198 = vmatmul.bf16.gmra.mxu0 %v1176
    %v1199 = vpop.f32.mrf.mxu0
    %v1200 = vadd.f32 0.0, %v1199
    %v1201 = vpop.f32.mrf.mxu0
    %1202 = vdwg.mxu0
    %1203 = vmatpush.bf16.msra.mxu0 %v903
    %1204 = vmatpush.bf16.msra.mxu0 %v899
    %1205 = vmatpush.bf16.msra.mxu0 %v895
    %1206 = vmatpush.bf16.msra.mxu0 %v891
    %1207 = vmatpush.bf16.msra.mxu0 %v887
    %1208 = vmatpush.bf16.msra.mxu0 %v883
    %1209 = vmatpush.bf16.msra.mxu0 %v879
    %1210 = vmatpush.bf16.msra.mxu0 %v875
    %1211 = vmatmul.bf16.gmra.mxu0 %v1176
    %v1212 = vpop.f32.mrf.mxu0
    %v1213 = vadd.f32 0.0, %v1212
    %v1214 = vpop.f32.mrf.mxu0
    %1215 = vdwg.mxu0
    %1216 = vmatpush.bf16.msra.mxu0 %v904
    %1217 = vmatpush.bf16.msra.mxu0 %v900
    %1218 = vmatpush.bf16.msra.mxu0 %v896
    %1219 = vmatpush.bf16.msra.mxu0 %v892
    %1220 = vmatpush.bf16.msra.mxu0 %v888
    %1221 = vmatpush.bf16.msra.mxu0 %v884
    %1222 = vmatpush.bf16.msra.mxu0 %v880
    %1223 = vmatpush.bf16.msra.mxu0 %v876
    %1224 = vmatmul.bf16.gmra.mxu0 %v1176
    %v1225 = vpop.f32.mrf.mxu0
    %v1226 = vadd.f32 0.0, %v1225
    %v1227 = vpop.f32.mrf.mxu0
    %1228 = vdwg.mxu0
    %v1229 = vadd.f32 %v422, %v1187
    %v1230 = vadd.f32 %v451, %v1200
    %v1231 = vadd.f32 %v480, %v1213
    %v1232 = vadd.f32 %v509, %v1226
    %v1233 = vxor.u32 %v1229, 2147483648
    %v1234 = vmul.f32 %v1233, 1.442695
    %v1235 = vpow.pop %v1234
    %v1236 = vadd.f32 %v1235, 1.0
    %v1237 = vrcp.pop %v1236
    %v1238 = vmul.f32 %v1236, %v1237
    %v1239 = vsub.f32 1.0, %v1238
    %v1240 = vmul.f32 %v1237, %v1239
    %v1241 = vadd.f32 %v1237, %v1240
    %vm1242 = vweird.f32 %v1236
    %vm1243 = vweird.f32 %v1237
    %vm1244 = vmor %vm1242, %vm1243
    %v1245 = vsel %vm1244, %v1237, %v1241
    %v1246 = vand.u32 2147483647, %v1236
    %vm1247 = vcmp.eq.f32.partialorder %v1246, 8.507059e+37
    %v1248 = vand.u32 %v1236, 2147483648
    %v1249 = vor.u32 1.1754944e-38, %v1248
    %v1250 = vsel %vm1247, %v1249, %v1245
    %v1251 = vmul.f32 1.0, %v1250
    %v1252 = vxor.u32 %v1230, 2147483648
    %v1253 = vmul.f32 %v1252, 1.442695
    %v1254 = vpow.pop %v1253
    %v1255 = vadd.f32 %v1254, 1.0
    %v1256 = vrcp.pop %v1255
    %v1257 = vmul.f32 %v1255, %v1256
    %v1258 = vsub.f32 1.0, %v1257
    %v1259 = vmul.f32 %v1256, %v1258
    %v1260 = vadd.f32 %v1256, %v1259
    %vm1261 = vweird.f32 %v1255
    %vm1262 = vweird.f32 %v1256
    %vm1263 = vmor %vm1261, %vm1262
    %v1264 = vsel %vm1263, %v1256, %v1260
    %v1265 = vand.u32 2147483647, %v1255
    %vm1266 = vcmp.eq.f32.partialorder %v1265, 8.507059e+37
    %v1267 = vand.u32 %v1255, 2147483648
    %v1268 = vor.u32 1.1754944e-38, %v1267
    %v1269 = vsel %vm1266, %v1268, %v1264
    %v1270 = vmul.f32 1.0, %v1269
    %v1271 = vtanh.pop %v1231
    %v1272 = vxor.u32 %v1232, 2147483648
    %v1273 = vmul.f32 %v1272, 1.442695
    %v1274 = vpow.pop %v1273
    %v1275 = vadd.f32 %v1274, 1.0
    %v1276 = vrcp.pop %v1275
    %v1277 = vmul.f32 %v1275, %v1276
    %v1278 = vsub.f32 1.0, %v1277
    %v1279 = vmul.f32 %v1276, %v1278
    %v1280 = vadd.f32 %v1276, %v1279
    %vm1281 = vweird.f32 %v1275
    %vm1282 = vweird.f32 %v1276
    %vm1283 = vmor %vm1281, %vm1282
    %v1284 = vsel %vm1283, %v1276, %v1280
    %v1285 = vand.u32 2147483647, %v1275
    %vm1286 = vcmp.eq.f32.partialorder %v1285, 8.507059e+37
    %v1287 = vand.u32 %v1275, 2147483648
    %v1288 = vor.u32 1.1754944e-38, %v1287
    %v1289 = vsel %vm1286, %v1288, %v1284
    %v1290 = vmul.f32 1.0, %v1289
    %v1291 = vmul.f32 %v1270, %v1173
    %v1292 = vmul.f32 %v1251, %v1271
    %v1293 = vadd.f32 %v1291, %v1292
    %v1294 = vtanh.pop %v1293
    %v1295 = vmul.f32 %v1290, %v1294
    %v1296 = vpack.c.bf16 %v1295, %v1295
    %1297 = vmatpush.bf16.msra.mxu0 %v901
    %1298 = vmatpush.bf16.msra.mxu0 %v897
    %1299 = vmatpush.bf16.msra.mxu0 %v893
    %1300 = vmatpush.bf16.msra.mxu0 %v889
    %1301 = vmatpush.bf16.msra.mxu0 %v885
    %1302 = vmatpush.bf16.msra.mxu0 %v881
    %1303 = vmatpush.bf16.msra.mxu0 %v877
    %1304 = vmatpush.bf16.msra.mxu0 %v873
    %1305 = vmatmul.bf16.gmra.mxu0 %v1296
    %v1306 = vpop.f32.mrf.mxu0
    %v1307 = vadd.f32 0.0, %v1306
    %v1308 = vpop.f32.mrf.mxu0
    %1309 = vdwg.mxu0
    %1310 = vmatpush.bf16.msra.mxu0 %v902
    %1311 = vmatpush.bf16.msra.mxu0 %v898
    %1312 = vmatpush.bf16.msra.mxu0 %v894
    %1313 = vmatpush.bf16.msra.mxu0 %v890
    %1314 = vmatpush.bf16.msra.mxu0 %v886
    %1315 = vmatpush.bf16.msra.mxu0 %v882
    %1316 = vmatpush.bf16.msra.mxu0 %v878
    %1317 = vmatpush.bf16.msra.mxu0 %v874
    %1318 = vmatmul.bf16.gmra.mxu0 %v1296
    %v1319 = vpop.f32.mrf.mxu0
    %v1320 = vadd.f32 0.0, %v1319
    %v1321 = vpop.f32.mrf.mxu0
    %1322 = vdwg.mxu0
    %1323 = vmatpush.bf16.msra.mxu0 %v903
    %1324 = vmatpush.bf16.msra.mxu0 %v899
    %1325 = vmatpush.bf16.msra.mxu0 %v895
    %1326 = vmatpush.bf16.msra.mxu0 %v891
    %1327 = vmatpush.bf16.msra.mxu0 %v887
    %1328 = vmatpush.bf16.msra.mxu0 %v883
    %1329 = vmatpush.bf16.msra.mxu0 %v879
    %1330 = vmatpush.bf16.msra.mxu0 %v875
    %1331 = vmatmul.bf16.gmra.mxu0 %v1296
    %v1332 = vpop.f32.mrf.mxu0
    %v1333 = vadd.f32 0.0, %v1332
    %v1334 = vpop.f32.mrf.mxu0
    %1335 = vdwg.mxu0
    %1336 = vmatpush.bf16.msra.mxu0 %v904
    %1337 = vmatpush.bf16.msra.mxu0 %v900
    %1338 = vmatpush.bf16.msra.mxu0 %v896
    %1339 = vmatpush.bf16.msra.mxu0 %v892
    %1340 = vmatpush.bf16.msra.mxu0 %v888
    %1341 = vmatpush.bf16.msra.mxu0 %v884
    %1342 = vmatpush.bf16.msra.mxu0 %v880
    %1343 = vmatpush.bf16.msra.mxu0 %v876
    %1344 = vmatmul.bf16.gmra.mxu0 %v1296
    %v1345 = vpop.f32.mrf.mxu0
    %v1346 = vadd.f32 0.0, %v1345
    %v1347 = vpop.f32.mrf.mxu0
    %1348 = vdwg.mxu0
    %v1349 = vadd.f32 %v424, %v1307
    %v1350 = vadd.f32 %v453, %v1320
    %v1351 = vadd.f32 %v482, %v1333
    %v1352 = vadd.f32 %v511, %v1346
    %v1353 = vxor.u32 %v1349, 2147483648
    %v1354 = vmul.f32 %v1353, 1.442695
    %v1355 = vpow.pop %v1354
    %v1356 = vadd.f32 %v1355, 1.0
    %v1357 = vrcp.pop %v1356
    %v1358 = vmul.f32 %v1356, %v1357
    %v1359 = vsub.f32 1.0, %v1358
    %v1360 = vmul.f32 %v1357, %v1359
    %v1361 = vadd.f32 %v1357, %v1360
    %vm1362 = vweird.f32 %v1356
    %vm1363 = vweird.f32 %v1357
    %vm1364 = vmor %vm1362, %vm1363
    %v1365 = vsel %vm1364, %v1357, %v1361
    %v1366 = vand.u32 2147483647, %v1356
    %vm1367 = vcmp.eq.f32.partialorder %v1366, 8.507059e+37
    %v1368 = vand.u32 %v1356, 2147483648
    %v1369 = vor.u32 1.1754944e-38, %v1368
    %v1370 = vsel %vm1367, %v1369, %v1365
    %v1371 = vmul.f32 1.0, %v1370
    %v1372 = vxor.u32 %v1350, 2147483648
    %v1373 = vmul.f32 %v1372, 1.442695
    %v1374 = vpow.pop %v1373
    %v1375 = vadd.f32 %v1374, 1.0
    %v1376 = vrcp.pop %v1375
    %v1377 = vmul.f32 %v1375, %v1376
    %v1378 = vsub.f32 1.0, %v1377
    %v1379 = vmul.f32 %v1376, %v1378
    %v1380 = vadd.f32 %v1376, %v1379
    %vm1381 = vweird.f32 %v1375
    %vm1382 = vweird.f32 %v1376
    %vm1383 = vmor %vm1381, %vm1382
    %v1384 = vsel %vm1383, %v1376, %v1380
    %v1385 = vand.u32 2147483647, %v1375
    %vm1386 = vcmp.eq.f32.partialorder %v1385, 8.507059e+37
    %v1387 = vand.u32 %v1375, 2147483648
    %v1388 = vor.u32 1.1754944e-38, %v1387
    %v1389 = vsel %vm1386, %v1388, %v1384
    %v1390 = vmul.f32 1.0, %v1389
    %v1391 = vtanh.pop %v1351
    %v1392 = vxor.u32 %v1352, 2147483648
    %v1393 = vmul.f32 %v1392, 1.442695
    %v1394 = vpow.pop %v1393
    %v1395 = vadd.f32 %v1394, 1.0
    %v1396 = vrcp.pop %v1395
    %v1397 = vmul.f32 %v1395, %v1396
    %v1398 = vsub.f32 1.0, %v1397
    %v1399 = vmul.f32 %v1396, %v1398
    %v1400 = vadd.f32 %v1396, %v1399
    %vm1401 = vweird.f32 %v1395
    %vm1402 = vweird.f32 %v1396
    %vm1403 = vmor %vm1401, %vm1402
    %v1404 = vsel %vm1403, %v1396, %v1400
    %v1405 = vand.u32 2147483647, %v1395
    %vm1406 = vcmp.eq.f32.partialorder %v1405, 8.507059e+37
    %v1407 = vand.u32 %v1395, 2147483648
    %v1408 = vor.u32 1.1754944e-38, %v1407
    %v1409 = vsel %vm1406, %v1408, %v1404
    %v1410 = vmul.f32 1.0, %v1409
    %v1411 = vmul.f32 %v1390, %v1293
    %v1412 = vmul.f32 %v1371, %v1391
    %v1413 = vadd.f32 %v1411, %v1412
    %v1414 = vtanh.pop %v1413
    %v1415 = vmul.f32 %v1410, %v1414
    %v1416 = vpack.c.bf16 %v1415, %v1415
    %1417 = vmatpush.bf16.msra.mxu0 %v901
    %1418 = vmatpush.bf16.msra.mxu0 %v897
    %1419 = vmatpush.bf16.msra.mxu0 %v893
    %1420 = vmatpush.bf16.msra.mxu0 %v889
    %1421 = vmatpush.bf16.msra.mxu0 %v885
    %1422 = vmatpush.bf16.msra.mxu0 %v881
    %1423 = vmatpush.bf16.msra.mxu0 %v877
    %1424 = vmatpush.bf16.msra.mxu0 %v873
    %1425 = vmatmul.bf16.gmra.mxu0 %v1416
    %v1426 = vpop.f32.mrf.mxu0
    %v1427 = vadd.f32 0.0, %v1426
    %v1428 = vpop.f32.mrf.mxu0
    %1429 = vdwg.mxu0
    %1430 = vmatpush.bf16.msra.mxu0 %v902
    %1431 = vmatpush.bf16.msra.mxu0 %v898
    %1432 = vmatpush.bf16.msra.mxu0 %v894
    %1433 = vmatpush.bf16.msra.mxu0 %v890
    %1434 = vmatpush.bf16.msra.mxu0 %v886
    %1435 = vmatpush.bf16.msra.mxu0 %v882
    %1436 = vmatpush.bf16.msra.mxu0 %v878
    %1437 = vmatpush.bf16.msra.mxu0 %v874
    %1438 = vmatmul.bf16.gmra.mxu0 %v1416
    %v1439 = vpop.f32.mrf.mxu0
    %v1440 = vadd.f32 0.0, %v1439
    %v1441 = vpop.f32.mrf.mxu0
    %1442 = vdwg.mxu0
    %1443 = vmatpush.bf16.msra.mxu0 %v903
    %1444 = vmatpush.bf16.msra.mxu0 %v899
    %1445 = vmatpush.bf16.msra.mxu0 %v895
    %1446 = vmatpush.bf16.msra.mxu0 %v891
    %1447 = vmatpush.bf16.msra.mxu0 %v887
    %1448 = vmatpush.bf16.msra.mxu0 %v883
    %1449 = vmatpush.bf16.msra.mxu0 %v879
    %1450 = vmatpush.bf16.msra.mxu0 %v875
    %1451 = vmatmul.bf16.gmra.mxu0 %v1416
    %v1452 = vpop.f32.mrf.mxu0
    %v1453 = vadd.f32 0.0, %v1452
    %v1454 = vpop.f32.mrf.mxu0
    %1455 = vdwg.mxu0
    %1456 = vmatpush.bf16.msra.mxu0 %v904
    %1457 = vmatpush.bf16.msra.mxu0 %v900
    %1458 = vmatpush.bf16.msra.mxu0 %v896
    %1459 = vmatpush.bf16.msra.mxu0 %v892
    %1460 = vmatpush.bf16.msra.mxu0 %v888
    %1461 = vmatpush.bf16.msra.mxu0 %v884
    %1462 = vmatpush.bf16.msra.mxu0 %v880
    %1463 = vmatpush.bf16.msra.mxu0 %v876
    %1464 = vmatmul.bf16.gmra.mxu0 %v1416
    %v1465 = vpop.f32.mrf.mxu0
    %v1466 = vadd.f32 0.0, %v1465
    %v1467 = vpop.f32.mrf.mxu0
    %1468 = vdwg.mxu0
    %v1469 = vadd.f32 %v427, %v1427
    %v1470 = vadd.f32 %v456, %v1440
    %v1471 = vadd.f32 %v485, %v1453
    %v1472 = vadd.f32 %v514, %v1466
    %v1473 = vxor.u32 %v1469, 2147483648
    %v1474 = vmul.f32 %v1473, 1.442695
    %v1475 = vpow.pop %v1474
    %v1476 = vadd.f32 %v1475, 1.0
    %v1477 = vrcp.pop %v1476
    %v1478 = vmul.f32 %v1476, %v1477
    %v1479 = vsub.f32 1.0, %v1478
    %v1480 = vmul.f32 %v1477, %v1479
    %v1481 = vadd.f32 %v1477, %v1480
    %vm1482 = vweird.f32 %v1476
    %vm1483 = vweird.f32 %v1477
    %vm1484 = vmor %vm1482, %vm1483
    %v1485 = vsel %vm1484, %v1477, %v1481
    %v1486 = vand.u32 2147483647, %v1476
    %vm1487 = vcmp.eq.f32.partialorder %v1486, 8.507059e+37
    %v1488 = vand.u32 %v1476, 2147483648
    %v1489 = vor.u32 1.1754944e-38, %v1488
    %v1490 = vsel %vm1487, %v1489, %v1485
    %v1491 = vmul.f32 1.0, %v1490
    %v1492 = vxor.u32 %v1470, 2147483648
    %v1493 = vmul.f32 %v1492, 1.442695
    %v1494 = vpow.pop %v1493
    %v1495 = vadd.f32 %v1494, 1.0
    %v1496 = vrcp.pop %v1495
    %v1497 = vmul.f32 %v1495, %v1496
    %v1498 = vsub.f32 1.0, %v1497
    %v1499 = vmul.f32 %v1496, %v1498
    %v1500 = vadd.f32 %v1496, %v1499
    %vm1501 = vweird.f32 %v1495
    %vm1502 = vweird.f32 %v1496
    %vm1503 = vmor %vm1501, %vm1502
    %v1504 = vsel %vm1503, %v1496, %v1500
    %v1505 = vand.u32 2147483647, %v1495
    %vm1506 = vcmp.eq.f32.partialorder %v1505, 8.507059e+37
    %v1507 = vand.u32 %v1495, 2147483648
    %v1508 = vor.u32 1.1754944e-38, %v1507
    %v1509 = vsel %vm1506, %v1508, %v1504
    %v1510 = vmul.f32 1.0, %v1509
    %v1511 = vtanh.pop %v1471
    %v1512 = vxor.u32 %v1472, 2147483648
    %v1513 = vmul.f32 %v1512, 1.442695
    %v1514 = vpow.pop %v1513
    %v1515 = vadd.f32 %v1514, 1.0
    %v1516 = vrcp.pop %v1515
    %v1517 = vmul.f32 %v1515, %v1516
    %v1518 = vsub.f32 1.0, %v1517
    %v1519 = vmul.f32 %v1516, %v1518
    %v1520 = vadd.f32 %v1516, %v1519
    %vm1521 = vweird.f32 %v1515
    %vm1522 = vweird.f32 %v1516
    %vm1523 = vmor %vm1521, %vm1522
    %v1524 = vsel %vm1523, %v1516, %v1520
    %v1525 = vand.u32 2147483647, %v1515
    %vm1526 = vcmp.eq.f32.partialorder %v1525, 8.507059e+37
    %v1527 = vand.u32 %v1515, 2147483648
    %v1528 = vor.u32 1.1754944e-38, %v1527
    %v1529 = vsel %vm1526, %v1528, %v1524
    %v1530 = vmul.f32 1.0, %v1529
    %v1531 = vmul.f32 %v1510, %v1413
    %v1532 = vmul.f32 %v1491, %v1511
    %v1533 = vadd.f32 %v1531, %v1532
    %v1534 = vtanh.pop %v1533
    %v1535 = vmul.f32 %v1530, %v1534
    %v1536 = vpack.c.bf16 %v1535, %v1535
    %1537 = vmatpush.bf16.msra.mxu0 %v901
    %1538 = vmatpush.bf16.msra.mxu0 %v897
    %1539 = vmatpush.bf16.msra.mxu0 %v893
    %1540 = vmatpush.bf16.msra.mxu0 %v889
    %1541 = vmatpush.bf16.msra.mxu0 %v885
    %1542 = vmatpush.bf16.msra.mxu0 %v881
    %1543 = vmatpush.bf16.msra.mxu0 %v877
    %1544 = vmatpush.bf16.msra.mxu0 %v873
    %1545 = vmatmul.bf16.gmra.mxu0 %v1536
    %v1546 = vpop.f32.mrf.mxu0
    %v1547 = vadd.f32 0.0, %v1546
    %v1548 = vpop.f32.mrf.mxu0
    %1549 = vdwg.mxu0
    %1550 = vmatpush.bf16.msra.mxu0 %v902
    %1551 = vmatpush.bf16.msra.mxu0 %v898
    %1552 = vmatpush.bf16.msra.mxu0 %v894
    %1553 = vmatpush.bf16.msra.mxu0 %v890
    %1554 = vmatpush.bf16.msra.mxu0 %v886
    %1555 = vmatpush.bf16.msra.mxu0 %v882
    %1556 = vmatpush.bf16.msra.mxu0 %v878
    %1557 = vmatpush.bf16.msra.mxu0 %v874
    %1558 = vmatmul.bf16.gmra.mxu0 %v1536
    %v1559 = vpop.f32.mrf.mxu0
    %v1560 = vadd.f32 0.0, %v1559
    %v1561 = vpop.f32.mrf.mxu0
    %1562 = vdwg.mxu0
    %1563 = vmatpush.bf16.msra.mxu0 %v903
    %1564 = vmatpush.bf16.msra.mxu0 %v899
    %1565 = vmatpush.bf16.msra.mxu0 %v895
    %1566 = vmatpush.bf16.msra.mxu0 %v891
    %1567 = vmatpush.bf16.msra.mxu0 %v887
    %1568 = vmatpush.bf16.msra.mxu0 %v883
    %1569 = vmatpush.bf16.msra.mxu0 %v879
    %1570 = vmatpush.bf16.msra.mxu0 %v875
    %1571 = vmatmul.bf16.gmra.mxu0 %v1536
    %v1572 = vpop.f32.mrf.mxu0
    %v1573 = vadd.f32 0.0, %v1572
    %v1574 = vpop.f32.mrf.mxu0
    %1575 = vdwg.mxu0
    %1576 = vmatpush.bf16.msra.mxu0 %v904
    %1577 = vmatpush.bf16.msra.mxu0 %v900
    %1578 = vmatpush.bf16.msra.mxu0 %v896
    %1579 = vmatpush.bf16.msra.mxu0 %v892
    %1580 = vmatpush.bf16.msra.mxu0 %v888
    %1581 = vmatpush.bf16.msra.mxu0 %v884
    %1582 = vmatpush.bf16.msra.mxu0 %v880
    %1583 = vmatpush.bf16.msra.mxu0 %v876
    %1584 = vmatmul.bf16.gmra.mxu0 %v1536
    %v1585 = vpop.f32.mrf.mxu0
    %v1586 = vadd.f32 0.0, %v1585
    %v1587 = vpop.f32.mrf.mxu0
    %1588 = vdwg.mxu0
    %v1589 = vadd.f32 %v429, %v1547
    %v1590 = vadd.f32 %v458, %v1560
    %v1591 = vadd.f32 %v487, %v1573
    %v1592 = vadd.f32 %v516, %v1586
    %v1593 = vxor.u32 %v1589, 2147483648
    %v1594 = vmul.f32 %v1593, 1.442695
    %v1595 = vpow.pop %v1594
    %v1596 = vadd.f32 %v1595, 1.0
    %v1597 = vrcp.pop %v1596
    %v1598 = vmul.f32 %v1596, %v1597
    %v1599 = vsub.f32 1.0, %v1598
    %v1600 = vmul.f32 %v1597, %v1599
    %v1601 = vadd.f32 %v1597, %v1600
    %vm1602 = vweird.f32 %v1596
    %vm1603 = vweird.f32 %v1597
    %vm1604 = vmor %vm1602, %vm1603
    %v1605 = vsel %vm1604, %v1597, %v1601
    %v1606 = vand.u32 2147483647, %v1596
    %vm1607 = vcmp.eq.f32.partialorder %v1606, 8.507059e+37
    %v1608 = vand.u32 %v1596, 2147483648
    %v1609 = vor.u32 1.1754944e-38, %v1608
    %v1610 = vsel %vm1607, %v1609, %v1605
    %v1611 = vmul.f32 1.0, %v1610
    %v1612 = vxor.u32 %v1590, 2147483648
    %v1613 = vmul.f32 %v1612, 1.442695
    %v1614 = vpow.pop %v1613
    %v1615 = vadd.f32 %v1614, 1.0
    %v1616 = vrcp.pop %v1615
    %v1617 = vmul.f32 %v1615, %v1616
    %v1618 = vsub.f32 1.0, %v1617
    %v1619 = vmul.f32 %v1616, %v1618
    %v1620 = vadd.f32 %v1616, %v1619
    %vm1621 = vweird.f32 %v1615
    %vm1622 = vweird.f32 %v1616
    %vm1623 = vmor %vm1621, %vm1622
    %v1624 = vsel %vm1623, %v1616, %v1620
    %v1625 = vand.u32 2147483647, %v1615
    %vm1626 = vcmp.eq.f32.partialorder %v1625, 8.507059e+37
    %v1627 = vand.u32 %v1615, 2147483648
    %v1628 = vor.u32 1.1754944e-38, %v1627
    %v1629 = vsel %vm1626, %v1628, %v1624
    %v1630 = vmul.f32 1.0, %v1629
    %v1631 = vtanh.pop %v1591
    %v1632 = vxor.u32 %v1592, 2147483648
    %v1633 = vmul.f32 %v1632, 1.442695
    %v1634 = vpow.pop %v1633
    %v1635 = vadd.f32 %v1634, 1.0
    %v1636 = vrcp.pop %v1635
    %v1637 = vmul.f32 %v1635, %v1636
    %v1638 = vsub.f32 1.0, %v1637
    %v1639 = vmul.f32 %v1636, %v1638
    %v1640 = vadd.f32 %v1636, %v1639
    %vm1641 = vweird.f32 %v1635
    %vm1642 = vweird.f32 %v1636
    %vm1643 = vmor %vm1641, %vm1642
    %v1644 = vsel %vm1643, %v1636, %v1640
    %v1645 = vand.u32 2147483647, %v1635
    %vm1646 = vcmp.eq.f32.partialorder %v1645, 8.507059e+37
    %v1647 = vand.u32 %v1635, 2147483648
    %v1648 = vor.u32 1.1754944e-38, %v1647
    %v1649 = vsel %vm1646, %v1648, %v1644
    %v1650 = vmul.f32 1.0, %v1649
    %v1651 = vmul.f32 %v1630, %v1533
    %v1652 = vmul.f32 %v1611, %v1631
    %v1653 = vadd.f32 %v1651, %v1652
    %v1654 = vtanh.pop %v1653
    %v1655 = vmul.f32 %v1650, %v1654
    %v1656 = vpack.c.bf16 %v1655, %v1655
    %1657 = vmatpush.bf16.msra.mxu0 %v901
    %1658 = vmatpush.bf16.msra.mxu0 %v897
    %1659 = vmatpush.bf16.msra.mxu0 %v893
    %1660 = vmatpush.bf16.msra.mxu0 %v889
    %1661 = vmatpush.bf16.msra.mxu0 %v885
    %1662 = vmatpush.bf16.msra.mxu0 %v881
    %1663 = vmatpush.bf16.msra.mxu0 %v877
    %1664 = vmatpush.bf16.msra.mxu0 %v873
    %1665 = vmatmul.bf16.gmra.mxu0 %v1656
    %v1666 = vpop.f32.mrf.mxu0
    %v1667 = vadd.f32 0.0, %v1666
    %v1668 = vpop.f32.mrf.mxu0
    %1669 = vdwg.mxu0
    %1670 = vmatpush.bf16.msra.mxu0 %v902
    %1671 = vmatpush.bf16.msra.mxu0 %v898
    %1672 = vmatpush.bf16.msra.mxu0 %v894
    %1673 = vmatpush.bf16.msra.mxu0 %v890
    %1674 = vmatpush.bf16.msra.mxu0 %v886
    %1675 = vmatpush.bf16.msra.mxu0 %v882
    %1676 = vmatpush.bf16.msra.mxu0 %v878
    %1677 = vmatpush.bf16.msra.mxu0 %v874
    %1678 = vmatmul.bf16.gmra.mxu0 %v1656
    %v1679 = vpop.f32.mrf.mxu0
    %v1680 = vadd.f32 0.0, %v1679
    %v1681 = vpop.f32.mrf.mxu0
    %1682 = vdwg.mxu0
    %1683 = vmatpush.bf16.msra.mxu0 %v903
    %1684 = vmatpush.bf16.msra.mxu0 %v899
    %1685 = vmatpush.bf16.msra.mxu0 %v895
    %1686 = vmatpush.bf16.msra.mxu0 %v891
    %1687 = vmatpush.bf16.msra.mxu0 %v887
    %1688 = vmatpush.bf16.msra.mxu0 %v883
    %1689 = vmatpush.bf16.msra.mxu0 %v879
    %1690 = vmatpush.bf16.msra.mxu0 %v875
    %1691 = vmatmul.bf16.gmra.mxu0 %v1656
    %v1692 = vpop.f32.mrf.mxu0
    %v1693 = vadd.f32 0.0, %v1692
    %v1694 = vpop.f32.mrf.mxu0
    %1695 = vdwg.mxu0
    %1696 = vmatpush.bf16.msra.mxu0 %v904
    %1697 = vmatpush.bf16.msra.mxu0 %v900
    %1698 = vmatpush.bf16.msra.mxu0 %v896
    %1699 = vmatpush.bf16.msra.mxu0 %v892
    %1700 = vmatpush.bf16.msra.mxu0 %v888
    %1701 = vmatpush.bf16.msra.mxu0 %v884
    %1702 = vmatpush.bf16.msra.mxu0 %v880
    %1703 = vmatpush.bf16.msra.mxu0 %v876
    %1704 = vmatmul.bf16.gmra.mxu0 %v1656
    %v1705 = vpop.f32.mrf.mxu0
    %v1706 = vadd.f32 0.0, %v1705
    %v1707 = vpop.f32.mrf.mxu0
    %1708 = vdwg.mxu0
    %v1709 = vadd.f32 %v432, %v1667
    %v1710 = vadd.f32 %v461, %v1680
    %v1711 = vadd.f32 %v490, %v1693
    %v1712 = vadd.f32 %v519, %v1706
    %v1713 = vxor.u32 %v1709, 2147483648
    %v1714 = vmul.f32 %v1713, 1.442695
    %v1715 = vpow.pop %v1714
    %v1716 = vadd.f32 %v1715, 1.0
    %v1717 = vrcp.pop %v1716
    %v1718 = vmul.f32 %v1716, %v1717
    %v1719 = vsub.f32 1.0, %v1718
    %v1720 = vmul.f32 %v1717, %v1719
    %v1721 = vadd.f32 %v1717, %v1720
    %vm1722 = vweird.f32 %v1716
    %vm1723 = vweird.f32 %v1717
    %vm1724 = vmor %vm1722, %vm1723
    %v1725 = vsel %vm1724, %v1717, %v1721
    %v1726 = vand.u32 2147483647, %v1716
    %vm1727 = vcmp.eq.f32.partialorder %v1726, 8.507059e+37
    %v1728 = vand.u32 %v1716, 2147483648
    %v1729 = vor.u32 1.1754944e-38, %v1728
    %v1730 = vsel %vm1727, %v1729, %v1725
    %v1731 = vmul.f32 1.0, %v1730
    %v1732 = vxor.u32 %v1710, 2147483648
    %v1733 = vmul.f32 %v1732, 1.442695
    %v1734 = vpow.pop %v1733
    %v1735 = vadd.f32 %v1734, 1.0
    %v1736 = vrcp.pop %v1735
    %v1737 = vmul.f32 %v1735, %v1736
    %v1738 = vsub.f32 1.0, %v1737
    %v1739 = vmul.f32 %v1736, %v1738
    %v1740 = vadd.f32 %v1736, %v1739
    %vm1741 = vweird.f32 %v1735
    %vm1742 = vweird.f32 %v1736
    %vm1743 = vmor %vm1741, %vm1742
    %v1744 = vsel %vm1743, %v1736, %v1740
    %v1745 = vand.u32 2147483647, %v1735
    %vm1746 = vcmp.eq.f32.partialorder %v1745, 8.507059e+37
    %v1747 = vand.u32 %v1735, 2147483648
    %v1748 = vor.u32 1.1754944e-38, %v1747
    %v1749 = vsel %vm1746, %v1748, %v1744
    %v1750 = vmul.f32 1.0, %v1749
    %v1751 = vtanh.pop %v1711
    %v1752 = vxor.u32 %v1712, 2147483648
    %v1753 = vmul.f32 %v1752, 1.442695
    %v1754 = vpow.pop %v1753
    %v1755 = vadd.f32 %v1754, 1.0
    %v1756 = vrcp.pop %v1755
    %v1757 = vmul.f32 %v1755, %v1756
    %v1758 = vsub.f32 1.0, %v1757
    %v1759 = vmul.f32 %v1756, %v1758
    %v1760 = vadd.f32 %v1756, %v1759
    %vm1761 = vweird.f32 %v1755
    %vm1762 = vweird.f32 %v1756
    %vm1763 = vmor %vm1761, %vm1762
    %v1764 = vsel %vm1763, %v1756, %v1760
    %v1765 = vand.u32 2147483647, %v1755
    %vm1766 = vcmp.eq.f32.partialorder %v1765, 8.507059e+37
    %v1767 = vand.u32 %v1755, 2147483648
    %v1768 = vor.u32 1.1754944e-38, %v1767
    %v1769 = vsel %vm1766, %v1768, %v1764
    %v1770 = vmul.f32 1.0, %v1769
    %v1771 = vmul.f32 %v1750, %v1653
    %v1772 = vmul.f32 %v1731, %v1751
    %v1773 = vadd.f32 %v1771, %v1772
    %v1774 = vtanh.pop %v1773
    %v1775 = vmul.f32 %v1770, %v1774
    %v1776 = vpack.c.bf16 %v1775, %v1775
    %1777 = vmatpush.bf16.msra.mxu0 %v901
    %1778 = vmatpush.bf16.msra.mxu0 %v897
    %1779 = vmatpush.bf16.msra.mxu0 %v893
    %1780 = vmatpush.bf16.msra.mxu0 %v889
    %1781 = vmatpush.bf16.msra.mxu0 %v885
    %1782 = vmatpush.bf16.msra.mxu0 %v881
    %1783 = vmatpush.bf16.msra.mxu0 %v877
    %1784 = vmatpush.bf16.msra.mxu0 %v873
    %1785 = vmatmul.bf16.gmra.mxu0 %v1776
    %v1786 = vpop.f32.mrf.mxu0
    %v1787 = vadd.f32 0.0, %v1786
    %v1788 = vpop.f32.mrf.mxu0
    %1789 = vdwg.mxu0
    %1790 = vmatpush.bf16.msra.mxu0 %v902
    %1791 = vmatpush.bf16.msra.mxu0 %v898
    %1792 = vmatpush.bf16.msra.mxu0 %v894
    %1793 = vmatpush.bf16.msra.mxu0 %v890
    %1794 = vmatpush.bf16.msra.mxu0 %v886
    %1795 = vmatpush.bf16.msra.mxu0 %v882
    %1796 = vmatpush.bf16.msra.mxu0 %v878
    %1797 = vmatpush.bf16.msra.mxu0 %v874
    %1798 = vmatmul.bf16.gmra.mxu0 %v1776
    %v1799 = vpop.f32.mrf.mxu0
    %v1800 = vadd.f32 0.0, %v1799
    %v1801 = vpop.f32.mrf.mxu0
    %1802 = vdwg.mxu0
    %1803 = vmatpush.bf16.msra.mxu0 %v903
    %1804 = vmatpush.bf16.msra.mxu0 %v899
    %1805 = vmatpush.bf16.msra.mxu0 %v895
    %1806 = vmatpush.bf16.msra.mxu0 %v891
    %1807 = vmatpush.bf16.msra.mxu0 %v887
    %1808 = vmatpush.bf16.msra.mxu0 %v883
    %1809 = vmatpush.bf16.msra.mxu0 %v879
    %1810 = vmatpush.bf16.msra.mxu0 %v875
    %1811 = vmatmul.bf16.gmra.mxu0 %v1776
    %v1812 = vpop.f32.mrf.mxu0
    %v1813 = vadd.f32 0.0, %v1812
    %v1814 = vpop.f32.mrf.mxu0
    %1815 = vdwg.mxu0
    %1816 = vmatpush.bf16.msra.mxu0 %v904
    %1817 = vmatpush.bf16.msra.mxu0 %v900
    %1818 = vmatpush.bf16.msra.mxu0 %v896
    %1819 = vmatpush.bf16.msra.mxu0 %v892
    %1820 = vmatpush.bf16.msra.mxu0 %v888
    %1821 = vmatpush.bf16.msra.mxu0 %v884
    %1822 = vmatpush.bf16.msra.mxu0 %v880
    %1823 = vmatpush.bf16.msra.mxu0 %v876
    %1824 = vmatmul.bf16.gmra.mxu0 %v1776
    %v1825 = vpop.f32.mrf.mxu0
    %v1826 = vadd.f32 0.0, %v1825
    %v1827 = vpop.f32.mrf.mxu0
    %1828 = vdwg.mxu0
    %v1829 = vadd.f32 %v434, %v1787
    %v1830 = vadd.f32 %v463, %v1800
    %v1831 = vadd.f32 %v492, %v1813
    %v1832 = vadd.f32 %v521, %v1826
    %v1833 = vxor.u32 %v1829, 2147483648
    %v1834 = vmul.f32 %v1833, 1.442695
    %v1835 = vpow.pop %v1834
    %v1836 = vadd.f32 %v1835, 1.0
    %v1837 = vrcp.pop %v1836
    %v1838 = vmul.f32 %v1836, %v1837
    %v1839 = vsub.f32 1.0, %v1838
    %v1840 = vmul.f32 %v1837, %v1839
    %v1841 = vadd.f32 %v1837, %v1840
    %vm1842 = vweird.f32 %v1836
    %vm1843 = vweird.f32 %v1837
    %vm1844 = vmor %vm1842, %vm1843
    %v1845 = vsel %vm1844, %v1837, %v1841
    %v1846 = vand.u32 2147483647, %v1836
    %vm1847 = vcmp.eq.f32.partialorder %v1846, 8.507059e+37
    %v1848 = vand.u32 %v1836, 2147483648
    %v1849 = vor.u32 1.1754944e-38, %v1848
    %v1850 = vsel %vm1847, %v1849, %v1845
    %v1851 = vmul.f32 1.0, %v1850
    %v1852 = vxor.u32 %v1830, 2147483648
    %v1853 = vmul.f32 %v1852, 1.442695
    %v1854 = vpow.pop %v1853
    %v1855 = vadd.f32 %v1854, 1.0
    %v1856 = vrcp.pop %v1855
    %v1857 = vmul.f32 %v1855, %v1856
    %v1858 = vsub.f32 1.0, %v1857
    %v1859 = vmul.f32 %v1856, %v1858
    %v1860 = vadd.f32 %v1856, %v1859
    %vm1861 = vweird.f32 %v1855
    %vm1862 = vweird.f32 %v1856
    %vm1863 = vmor %vm1861, %vm1862
    %v1864 = vsel %vm1863, %v1856, %v1860
    %v1865 = vand.u32 2147483647, %v1855
    %vm1866 = vcmp.eq.f32.partialorder %v1865, 8.507059e+37
    %v1867 = vand.u32 %v1855, 2147483648
    %v1868 = vor.u32 1.1754944e-38, %v1867
    %v1869 = vsel %vm1866, %v1868, %v1864
    %v1870 = vmul.f32 1.0, %v1869
    %v1871 = vtanh.pop %v1831
    %v1872 = vxor.u32 %v1832, 2147483648
    %v1873 = vmul.f32 %v1872, 1.442695
    %v1874 = vpow.pop %v1873
    %v1875 = vadd.f32 %v1874, 1.0
    %v1876 = vrcp.pop %v1875
    %v1877 = vmul.f32 %v1875, %v1876
    %v1878 = vsub.f32 1.0, %v1877
    %v1879 = vmul.f32 %v1876, %v1878
    %v1880 = vadd.f32 %v1876, %v1879
    %vm1881 = vweird.f32 %v1875
    %vm1882 = vweird.f32 %v1876
    %vm1883 = vmor %vm1881, %vm1882
    %v1884 = vsel %vm1883, %v1876, %v1880
    %v1885 = vand.u32 2147483647, %v1875
    %vm1886 = vcmp.eq.f32.partialorder %v1885, 8.507059e+37
    %v1887 = vand.u32 %v1875, 2147483648
    %v1888 = vor.u32 1.1754944e-38, %v1887
    %v1889 = vsel %vm1886, %v1888, %v1884
    %v1890 = vmul.f32 1.0, %v1889
    %v1891 = vmul.f32 %v1870, %v1773
    %v1892 = vmul.f32 %v1851, %v1871
    %v1893 = vadd.f32 %v1891, %v1892
    %v1894 = vtanh.pop %v1893
    %v1895 = vmul.f32 %v1890, %v1894
    %v1896 = vpack.c.bf16 %v1895, %v1895
    %v1929 = vunpack.c.l.b16 %v149
    %v1930 = vunpack.c.h.b16 %v149
    %v1931 = vunpack.c.l.b16 %v150
    %v1932 = vunpack.c.h.b16 %v150
    %v1933 = vunpack.c.l.b16 %v151
    %v1934 = vunpack.c.h.b16 %v151
    %v1935 = vunpack.c.l.b16 %v152
    %v1936 = vunpack.c.h.b16 %v152
    %v1937 = vunpack.c.l.b16 %v153
    %v1938 = vunpack.c.h.b16 %v153
    %v1939 = vunpack.c.l.b16 %v154
    %v1940 = vunpack.c.h.b16 %v154
    %v1941 = vunpack.c.l.b16 %v155
    %v1942 = vunpack.c.h.b16 %v155
    %v1943 = vunpack.c.l.b16 %v156
    %v1944 = vunpack.c.h.b16 %v156
    %v1945 = vunpack.c.l.b16 %v157
    %v1946 = vunpack.c.h.b16 %v157
    %v1947 = vunpack.c.l.b16 %v158
    %v1948 = vunpack.c.h.b16 %v158
    %v1949 = vunpack.c.l.b16 %v159
    %v1950 = vunpack.c.h.b16 %v159
    %v1951 = vunpack.c.l.b16 %v160
    %v1952 = vunpack.c.h.b16 %v160
    %v1953 = vunpack.c.l.b16 %v161
    %v1954 = vunpack.c.h.b16 %v161
    %v1955 = vunpack.c.l.b16 %v162
    %v1956 = vunpack.c.h.b16 %v162
    %v1957 = vunpack.c.l.b16 %v163
    %v1958 = vunpack.c.h.b16 %v163
    %v1959 = vunpack.c.l.b16 %v164
    %v1960 = vunpack.c.h.b16 %v164
    %v1961 = vunpack.c.l.b16 %v165
    %v1962 = vunpack.c.h.b16 %v165
    %v1963 = vunpack.c.l.b16 %v166
    %v1964 = vunpack.c.h.b16 %v166
    %v1965 = vunpack.c.l.b16 %v167
    %v1966 = vunpack.c.h.b16 %v167
    %v1967 = vunpack.c.l.b16 %v168
    %v1968 = vunpack.c.h.b16 %v168
    %v1969 = vunpack.c.l.b16 %v169
    %v1970 = vunpack.c.h.b16 %v169
    %v1971 = vunpack.c.l.b16 %v170
    %v1972 = vunpack.c.h.b16 %v170
    %v1973 = vunpack.c.l.b16 %v171
    %v1974 = vunpack.c.h.b16 %v171
    %v1975 = vunpack.c.l.b16 %v172
    %v1976 = vunpack.c.h.b16 %v172
    %v1977 = vunpack.c.l.b16 %v173
    %v1978 = vunpack.c.h.b16 %v173
    %v1979 = vunpack.c.l.b16 %v174
    %v1980 = vunpack.c.h.b16 %v174
    %v1981 = vunpack.c.l.b16 %v175
    %v1982 = vunpack.c.h.b16 %v175
    %v1983 = vunpack.c.l.b16 %v176
    %v1984 = vunpack.c.h.b16 %v176
    %v1985 = vunpack.c.l.b16 %v177
    %v1986 = vunpack.c.h.b16 %v177
    %v1987 = vunpack.c.l.b16 %v178
    %v1988 = vunpack.c.h.b16 %v178
    %v1989 = vunpack.c.l.b16 %v179
    %v1990 = vunpack.c.h.b16 %v179
    %v1991 = vunpack.c.l.b16 %v180
    %v1992 = vunpack.c.h.b16 %v180
    %v1993 = vpack.c.b16 %v1933, %v1929
    %v1994 = vpack.c.b16 %v1934, %v1930
    %v1995 = vpack.c.b16 %v1935, %v1931
    %v1996 = vpack.c.b16 %v1936, %v1932
    %v1997 = vpack.c.b16 %v1941, %v1937
    %v1998 = vpack.c.b16 %v1942, %v1938
    %v1999 = vpack.c.b16 %v1943, %v1939
    %v2000 = vpack.c.b16 %v1944, %v1940
    %v2001 = vpack.c.b16 %v1949, %v1945
    %v2002 = vpack.c.b16 %v1950, %v1946
    %v2003 = vpack.c.b16 %v1951, %v1947
    %v2004 = vpack.c.b16 %v1952, %v1948
    %v2005 = vpack.c.b16 %v1957, %v1953
    %v2006 = vpack.c.b16 %v1958, %v1954
    %v2007 = vpack.c.b16 %v1959, %v1955
    %v2008 = vpack.c.b16 %v1960, %v1956
    %v2009 = vpack.c.b16 %v1965, %v1961
    %v2010 = vpack.c.b16 %v1966, %v1962
    %v2011 = vpack.c.b16 %v1967, %v1963
    %v2012 = vpack.c.b16 %v1968, %v1964
    %v2013 = vpack.c.b16 %v1973, %v1969
    %v2014 = vpack.c.b16 %v1974, %v1970
    %v2015 = vpack.c.b16 %v1975, %v1971
    %v2016 = vpack.c.b16 %v1976, %v1972
    %v2017 = vpack.c.b16 %v1981, %v1977
    %v2018 = vpack.c.b16 %v1982, %v1978
    %v2019 = vpack.c.b16 %v1983, %v1979
    %v2020 = vpack.c.b16 %v1984, %v1980
    %v2021 = vpack.c.b16 %v1989, %v1985
    %v2022 = vpack.c.b16 %v1990, %v1986
    %v2023 = vpack.c.b16 %v1991, %v1987
    %v2024 = vpack.c.b16 %v1992, %v1988
    %2057 = vmatpush.bf16.msra.mxu0 %v2021
    %2058 = vmatpush.bf16.msra.mxu0 %v2017
    %2059 = vmatpush.bf16.msra.mxu0 %v2013
    %2060 = vmatpush.bf16.msra.mxu0 %v2009
    %2061 = vmatpush.bf16.msra.mxu0 %v2005
    %2062 = vmatpush.bf16.msra.mxu0 %v2001
    %2063 = vmatpush.bf16.msra.mxu0 %v1997
    %2064 = vmatpush.bf16.msra.mxu0 %v1993
    %2065 = vmatmul.bf16.gmra.mxu0 %v1896
    %v2066 = vpop.f32.mrf.mxu0
    %v2067 = vadd.f32 0.0, %v2066
    %v2068 = vpop.f32.mrf.mxu0
    %2069 = vdwg.mxu0
    %2070 = vmatpush.bf16.msra.mxu0 %v2022
    %2071 = vmatpush.bf16.msra.mxu0 %v2018
    %2072 = vmatpush.bf16.msra.mxu0 %v2014
    %2073 = vmatpush.bf16.msra.mxu0 %v2010
    %2074 = vmatpush.bf16.msra.mxu0 %v2006
    %2075 = vmatpush.bf16.msra.mxu0 %v2002
    %2076 = vmatpush.bf16.msra.mxu0 %v1998
    %2077 = vmatpush.bf16.msra.mxu0 %v1994
    %2078 = vmatmul.bf16.gmra.mxu0 %v1896
    %v2079 = vpop.f32.mrf.mxu0
    %v2080 = vadd.f32 0.0, %v2079
    %v2081 = vpop.f32.mrf.mxu0
    %2082 = vdwg.mxu0
    %2083 = vmatpush.bf16.msra.mxu0 %v2023
    %2084 = vmatpush.bf16.msra.mxu0 %v2019
    %2085 = vmatpush.bf16.msra.mxu0 %v2015
    %2086 = vmatpush.bf16.msra.mxu0 %v2011
    %2087 = vmatpush.bf16.msra.mxu0 %v2007
    %2088 = vmatpush.bf16.msra.mxu0 %v2003
    %2089 = vmatpush.bf16.msra.mxu0 %v1999
    %2090 = vmatpush.bf16.msra.mxu0 %v1995
    %2091 = vmatmul.bf16.gmra.mxu0 %v1896
    %v2092 = vpop.f32.mrf.mxu0
    %v2093 = vadd.f32 0.0, %v2092
    %v2094 = vpop.f32.mrf.mxu0
    %2095 = vdwg.mxu0
    %2096 = vmatpush.bf16.msra.mxu0 %v2024
    %2097 = vmatpush.bf16.msra.mxu0 %v2020
    %2098 = vmatpush.bf16.msra.mxu0 %v2016
    %2099 = vmatpush.bf16.msra.mxu0 %v2012
    %2100 = vmatpush.bf16.msra.mxu0 %v2008
    %2101 = vmatpush.bf16.msra.mxu0 %v2004
    %2102 = vmatpush.bf16.msra.mxu0 %v2000
    %2103 = vmatpush.bf16.msra.mxu0 %v1996
    %2104 = vmatmul.bf16.gmra.mxu0 %v1896
    %v2105 = vpop.f32.mrf.mxu0
    %v2106 = vadd.f32 0.0, %v2105
    %v2107 = vpop.f32.mrf.mxu0
    %2108 = vdwg.mxu0
    %v2109 = vadd.f32 %v735, %v2067
    %v2110 = vadd.f32 %v748, %v2080
    %v2111 = vadd.f32 %v761, %v2093
    %v2112 = vadd.f32 %v774, %v2106
    %v2113 = vxor.u32 %v2109, 2147483648
    %v2114 = vmul.f32 %v2113, 1.442695
    %v2115 = vpow.pop %v2114
    %v2116 = vadd.f32 %v2115, 1.0
    %v2117 = vrcp.pop %v2116
    %v2118 = vmul.f32 %v2116, %v2117
    %v2119 = vsub.f32 1.0, %v2118
    %v2120 = vmul.f32 %v2117, %v2119
    %v2121 = vadd.f32 %v2117, %v2120
    %vm2122 = vweird.f32 %v2116
    %vm2123 = vweird.f32 %v2117
    %vm2124 = vmor %vm2122, %vm2123
    %v2125 = vsel %vm2124, %v2117, %v2121
    %v2126 = vand.u32 2147483647, %v2116
    %vm2127 = vcmp.eq.f32.partialorder %v2126, 8.507059e+37
    %v2128 = vand.u32 %v2116, 2147483648
    %v2129 = vor.u32 1.1754944e-38, %v2128
    %v2130 = vsel %vm2127, %v2129, %v2125
    %v2131 = vmul.f32 1.0, %v2130
    %v2132 = vxor.u32 %v2110, 2147483648
    %v2133 = vmul.f32 %v2132, 1.442695
    %v2134 = vpow.pop %v2133
    %v2135 = vadd.f32 %v2134, 1.0
    %v2136 = vrcp.pop %v2135
    %v2137 = vmul.f32 %v2135, %v2136
    %v2138 = vsub.f32 1.0, %v2137
    %v2139 = vmul.f32 %v2136, %v2138
    %v2140 = vadd.f32 %v2136, %v2139
    %vm2141 = vweird.f32 %v2135
    %vm2142 = vweird.f32 %v2136
    %vm2143 = vmor %vm2141, %vm2142
    %v2144 = vsel %vm2143, %v2136, %v2140
    %v2145 = vand.u32 2147483647, %v2135
    %vm2146 = vcmp.eq.f32.partialorder %v2145, 8.507059e+37
    %v2147 = vand.u32 %v2135, 2147483648
    %v2148 = vor.u32 1.1754944e-38, %v2147
    %v2149 = vsel %vm2146, %v2148, %v2144
    %v2150 = vmul.f32 1.0, %v2149
    %v2151 = vtanh.pop %v2111
    %v2152 = vxor.u32 %v2112, 2147483648
    %v2153 = vmul.f32 %v2152, 1.442695
    %v2154 = vpow.pop %v2153
    %v2155 = vadd.f32 %v2154, 1.0
    %v2156 = vrcp.pop %v2155
    %v2157 = vmul.f32 %v2155, %v2156
    %v2158 = vsub.f32 1.0, %v2157
    %v2159 = vmul.f32 %v2156, %v2158
    %v2160 = vadd.f32 %v2156, %v2159
    %vm2161 = vweird.f32 %v2155
    %vm2162 = vweird.f32 %v2156
    %vm2163 = vmor %vm2161, %vm2162
    %v2164 = vsel %vm2163, %v2156, %v2160
    %v2165 = vand.u32 2147483647, %v2155
    %vm2166 = vcmp.eq.f32.partialorder %v2165, 8.507059e+37
    %v2167 = vand.u32 %v2155, 2147483648
    %v2168 = vor.u32 1.1754944e-38, %v2167
    %v2169 = vsel %vm2166, %v2168, %v2164
    %v2170 = vmul.f32 1.0, %v2169
    %v2171 = vmul.f32 %v2150, %v1893
    %v2172 = vmul.f32 %v2131, %v2151
    %v2173 = vadd.f32 %v2171, %v2172
    %v2174 = vtanh.pop %v2173
    %v2175 = vmul.f32 %v2170, %v2174
    %v2176 = vpack.c.bf16 %v2175, %v2175
    %v2177 = vld [vmem:[%s7] sm:$0xf]
    %v2178 = vld [vmem:[%s7 + $0x4] sm:$0xf]
    %v2179 = vld [vmem:[%s7 + $0x8] sm:$0xf]
    %v2180 = vld [vmem:[%s7 + $0xc] sm:$0xf]
    %v2181 = vld [vmem:[%s7 + $0x10] sm:$0xf]
    %v2182 = vld [vmem:[%s7 + $0x14] sm:$0xf]
    %v2183 = vld [vmem:[%s7 + $0x18] sm:$0xf]
    %v2184 = vld [vmem:[%s7 + $0x1c] sm:$0xf]
    %v2185 = vld [vmem:[%s7 + $0x20] sm:$0xf]
    %v2186 = vld [vmem:[%s7 + $0x24] sm:$0xf]
    %v2187 = vld [vmem:[%s7 + $0x28] sm:$0xf]
    %v2188 = vld [vmem:[%s7 + $0x2c] sm:$0xf]
    %v2189 = vld [vmem:[%s7 + $0x30] sm:$0xf]
    %v2190 = vld [vmem:[%s7 + $0x34] sm:$0xf]
    %v2191 = vld [vmem:[%s7 + $0x38] sm:$0xf]
    %v2192 = vld [vmem:[%s7 + $0x3c] sm:$0xf]
    %v2193 = vld [vmem:[%s8] sm:$0x1]
    %v2195 = vperm.slane %v2193, 0
    %v2213 = vunpack.c.l.b16 %v2177
    %v2214 = vunpack.c.l.b16 %v2178
    %v2215 = vunpack.c.l.b16 %v2179
    %v2216 = vunpack.c.l.b16 %v2180
    %v2217 = vunpack.c.l.b16 %v2181
    %v2218 = vunpack.c.l.b16 %v2182
    %v2219 = vunpack.c.l.b16 %v2183
    %v2220 = vunpack.c.l.b16 %v2184
    %v2221 = vunpack.c.l.b16 %v2185
    %v2222 = vunpack.c.l.b16 %v2186
    %v2223 = vunpack.c.l.b16 %v2187
    %v2224 = vunpack.c.l.b16 %v2188
    %v2225 = vunpack.c.l.b16 %v2189
    %v2226 = vunpack.c.l.b16 %v2190
    %v2227 = vunpack.c.l.b16 %v2191
    %v2228 = vunpack.c.l.b16 %v2192
    %v2229 = vpack.c.b16 %v2214, %v2213
    %v2230 = vpack.c.b16 %v2216, %v2215
    %v2231 = vpack.c.b16 %v2218, %v2217
    %v2232 = vpack.c.b16 %v2220, %v2219
    %v2233 = vpack.c.b16 %v2222, %v2221
    %v2234 = vpack.c.b16 %v2224, %v2223
    %v2235 = vpack.c.b16 %v2226, %v2225
    %v2236 = vpack.c.b16 %v2228, %v2227
    %2245 = vmatpush.bf16.msra.mxu0 %v2236
    %2246 = vmatpush.bf16.msra.mxu0 %v2235
    %2247 = vmatpush.bf16.msra.mxu0 %v2234
    %2248 = vmatpush.bf16.msra.mxu0 %v2233
    %2249 = vmatpush.bf16.msra.mxu0 %v2232
    %2250 = vmatpush.bf16.msra.mxu0 %v2231
    %2251 = vmatpush.bf16.msra.mxu0 %v2230
    %2252 = vmatpush.bf16.msra.mxu0 %v2229
    %2253 = vmatmul.bf16.gmra.mxu0 %v2176
    %v2254 = vpop.f32.mrf.mxu0
    %v2255 = vadd.f32 %v2195, %v2254
    %v2256 = vpop.f32.mrf.mxu0
    %2257 = vdwg.mxu0
    %2258 = vst [vmem:[%s9] sm:$0xff] %v2255
    // Predicated region
    $region58: #{forward.1} parent=1 // pred_check
      _
    $region59: #{forward.1} parent=1 // pred_check_branch
      %2260 = sbr.rel (0) target = $region61
    $region60: #{forward.1} parent=1 // pred_region
      _
    $region61: #{forward.1} parent=1 // pred_fallthru
      _
    // Predicated region
    $region62: #{forward.1} parent=1 // pred_check
      _
    $region63: #{forward.1} parent=1 // pred_check_branch
      %2262 = sbr.rel (0) target = $region65
    $region64: #{forward.1} parent=1 // pred_region
      _
    $region65: #{forward.1} parent=1 // pred_fallthru
      _
    %2263 = vsyncpa [#allocation3], 1
    %2264 = vsyncpa [#allocation5], 1
    %2265 = vsyncpa [#allocation8], 1

</llo_original>
